<compile_context>
chip_gen: v5e
topology: v5e:2x2
jax: 0.10.0
libtpu: 0.0.40
codegen_flags: <defaults>
</compile_context>

<pallas_src>
import math

import jax
import jax.numpy as jnp
from jax.experimental import pallas as pl
from jax.experimental.pallas import tpu as pltpu

# Model hyper-parameters (small, consistent with the module's config).
B = 2               # batch
T = 8               # sequence length (block_size)
C = 32              # n_embd
N_HEAD = 4          # n_head
HD = C // N_HEAD    # head dim = 8
USE_BIAS = True
DROPOUT = 0.0       # inference; attn/resid dropout are no-ops
OUT_PAD = ((C + 127) // 128) * 128   # lane-dense (128-multiple) padded output width


def causal_attn_kernel(x_ref, wq_ref, wk_ref, wv_ref, bq_ref, bk_ref, bv_ref,
                       wp_ref, bp_ref, out_ref):
    # x_ref: (B*T, C) bf16.  Per-head weight stacks: (H, C, HD) bf16 (Q pre-scaled),
    # biases (H, 1, HD) f32, wp_ref: (H, HD, OUT_PAD) bf16, bp_ref: (1, OUT_PAD) f32.
    xf = x_ref[...]                                              # (B*T, C) bf16

    # Additive causal bias (0 keep / -1e30 drop), computed once and reused per head.
    row = jax.lax.broadcasted_iota(jnp.int32, (T, T), 0)
    col = jax.lax.broadcasted_iota(jnp.int32, (T, T), 1)
    causal_bias = jnp.where(row >= col, 0.0, -1e30).astype(jnp.float32)  # (T, T)

    acc = jnp.zeros((B * T, OUT_PAD), dtype=jnp.float32)         # lane-dense accumulator

    # Static head loop (4 iters).  Heads are indexed on a leading ref axis, so there
    # is no lane slicing; the batch dim is handled by batched dot_generals below.
    for h in range(N_HEAD):
        q = jnp.dot(xf, wq_ref[h], preferred_element_type=jnp.float32) + bq_ref[h]  # (B*T, HD)
        k = jnp.dot(xf, wk_ref[h], preferred_element_type=jnp.float32) + bk_ref[h]
        v = jnp.dot(xf, wv_ref[h], preferred_element_type=jnp.float32) + bv_ref[h]

        # Leading-dim split (sublane-tile aligned, last dim unchanged) -> (B, T, HD).
        q3 = q.reshape(B, T, HD).astype(jnp.bfloat16)
        k3 = k.reshape(B, T, HD).astype(jnp.bfloat16)
        v3 = v.reshape(B, T, HD).astype(jnp.bfloat16)

        # Scores for both batch elements at once (scale already folded into Wq/bq).
        s = jnp.einsum('bqd,bkd->bqk', q3, k3,
                       preferred_element_type=jnp.float32)       # (B, T, T) f32
        s = s + causal_bias[None, :, :]

        m = jnp.max(s, axis=-1, keepdims=True)
        p = jnp.exp(s - m)
        denom = jnp.sum(p, axis=-1, keepdims=True)
        p = p * pl.reciprocal(denom, approx=True)                # EUP reciprocal

        y = jnp.einsum('bqk,bkd->bqd', p.astype(jnp.bfloat16), v3,
                       preferred_element_type=jnp.float32)       # (B, T, HD) f32

        # Head-merge fused into the (lane-padded) output projection: no concatenate.
        yf = y.reshape(B * T, HD).astype(jnp.bfloat16)           # (B*T, HD)
        acc = acc + jnp.dot(yf, wp_ref[h], preferred_element_type=jnp.float32)

    out_ref[...] = (acc + bp_ref[...]).astype(out_ref.dtype)     # unmasked 128-lane store


def causal_self_attention(x, w_qkv, b_qkv, w_proj, b_proj):
    """x: (B, T, C) float32.  Weights stored as (in, out) so forward is x @ W (+ b)."""
    assert x.shape == (B, T, C)
    scale = 1.0 / math.sqrt(HD)

    # ---- wrapper-side preprocessing (free relative to the kernel) ----
    wq = w_qkv[:, 0 * C:1 * C]
    wk = w_qkv[:, 1 * C:2 * C]
    wv = w_qkv[:, 2 * C:3 * C]
    bq = b_qkv[0, 0 * C:1 * C]
    bk = b_qkv[0, 1 * C:2 * C]
    bv = b_qkv[0, 2 * C:3 * C]

    def per_head(w):                       # (C, C) -> (H, C, HD)
        return w.reshape(C, N_HEAD, HD).transpose(1, 0, 2)

    wq_h = (per_head(wq) * scale).astype(jnp.bfloat16)           # scale folded into Q
    wk_h = per_head(wk).astype(jnp.bfloat16)
    wv_h = per_head(wv).astype(jnp.bfloat16)
    bq_h = (bq.reshape(N_HEAD, 1, HD) * scale).astype(jnp.float32)
    bk_h = bk.reshape(N_HEAD, 1, HD).astype(jnp.float32)
    bv_h = bv.reshape(N_HEAD, 1, HD).astype(jnp.float32)

    # Per-head W_proj slices, zero-padded to 128 output lanes for a lane-dense store.
    wp_h = jnp.zeros((N_HEAD, HD, OUT_PAD), jnp.float32)
    wp_h = wp_h.at[:, :, :C].set(w_proj.reshape(N_HEAD, HD, C)).astype(jnp.bfloat16)
    bp_pad = jnp.zeros((1, OUT_PAD), jnp.float32).at[:, :C].set(b_proj)

    x_flat = x.reshape(B * T, C).astype(jnp.bfloat16)

    out_pad = pl.pallas_call(
        causal_attn_kernel,
        out_shape=jax.ShapeDtypeStruct((B * T, OUT_PAD), jnp.float32),
        grid_spec=pltpu.PrefetchScalarGridSpec(
            num_scalar_prefetch=0,
            grid=(1,),                                            # single invocation
            in_specs=[
                pl.BlockSpec((B * T, C), lambda i: (0, 0)),              # x (flat)
                pl.BlockSpec((N_HEAD, C, HD), lambda i: (0, 0, 0)),      # Wq (scaled)
                pl.BlockSpec((N_HEAD, C, HD), lambda i: (0, 0, 0)),      # Wk
                pl.BlockSpec((N_HEAD, C, HD), lambda i: (0, 0, 0)),      # Wv
                pl.BlockSpec((N_HEAD, 1, HD), lambda i: (0, 0, 0)),      # bq (scaled)
                pl.BlockSpec((N_HEAD, 1, HD), lambda i: (0, 0, 0)),      # bk
                pl.BlockSpec((N_HEAD, 1, HD), lambda i: (0, 0, 0)),      # bv
                pl.BlockSpec((N_HEAD, HD, OUT_PAD), lambda i: (0, 0, 0)),  # Wproj (padded)
                pl.BlockSpec((1, OUT_PAD), lambda i: (0, 0)),            # bproj (padded)
            ],
            out_specs=pl.BlockSpec((B * T, OUT_PAD), lambda i: (0, 0)),
        ),
        compiler_params=pltpu.CompilerParams(
            dimension_semantics=("arbitrary",)),
    )(x_flat, wq_h, wk_h, wv_h, bq_h, bk_h, bv_h, wp_h, bp_pad)

    return out_pad[:, :C].reshape(B, T, C)


def reference(x, w_qkv, b_qkv, w_proj, b_proj):
    """Pure-JAX f32 reference mirroring the PyTorch forward (dropout=0, eval)."""
    Bx, Tx, Cx = x.shape
    qkv = x @ w_qkv + b_qkv[0]
    q, k, v = jnp.split(qkv, 3, axis=-1)

    def split_heads(t):
        return t.reshape(Bx, Tx, N_HEAD, HD).transpose(0, 2, 1, 3)  # (B, nh, T, hd)

    q, k, v = split_heads(q), split_heads(k), split_heads(v)
    att = jnp.einsum('bhqd,bhkd->bhqk', q, k) / math.sqrt(HD)
    mask = jnp.tril(jnp.ones((Tx, Tx), bool))
    att = jnp.where(mask[None, None], att, -jnp.inf)
    att = jax.nn.softmax(att, axis=-1)
    y = jnp.einsum('bhqk,bhkd->bhqd', att, v)
    y = y.transpose(0, 2, 1, 3).reshape(Bx, Tx, Cx)
    return y @ w_proj + b_proj[0]


if __name__ == "__main__":
    key = jax.random.PRNGKey(0)
    k_x, k_wqkv, k_bqkv, k_wproj, k_bproj = jax.random.split(key, 5)

    # Deterministic parameter init mimicking nn.Linear (uniform +-1/sqrt(fan_in)).
    bound = 1.0 / math.sqrt(C)
    x = jax.random.normal(k_x, (B, T, C), dtype=jnp.float32)
    # Stored as (in_features, out_features) so forward is x @ W (+ b).
    w_qkv = jax.random.uniform(k_wqkv, (C, 3 * C), jnp.float32, -bound, bound)
    b_qkv = (jax.random.uniform(k_bqkv, (1, 3 * C), jnp.float32, -bound, bound)
             if USE_BIAS else jnp.zeros((1, 3 * C), jnp.float32))
    w_proj = jax.random.uniform(k_wproj, (C, C), jnp.float32, -bound, bound)
    b_proj = (jax.random.uniform(k_bproj, (1, C), jnp.float32, -bound, bound)
              if USE_BIAS else jnp.zeros((1, C), jnp.float32))

    out = causal_self_attention(x, w_qkv, b_qkv, w_proj, b_proj)
    out = jax.block_until_ready(out)

    ref = reference(x, w_qkv, b_qkv, w_proj, b_proj)
    assert out.shape == (B, T, C)
    # Tolerance loosened for bf16 MXU inputs (f32 accumulation), per the perf review.
    assert jnp.allclose(out, ref, atol=2e-2, rtol=2e-2), "mismatch vs JAX reference"

    # TODO(synk): dropout (attn_dropout / resid_dropout) is a no-op here (p=0 / eval mode).
    print("KERNEL_OK")
</pallas_src>

<mosaic_0001>
module attributes {stable_mosaic.version = 11 : i64} {
  func.func @causal_attn_kernel(%arg0: i32, %arg1: memref<16x32xbf16, #tpu.memory_space<vmem>>, %arg2: memref<4x32x8xbf16, #tpu.memory_space<vmem>>, %arg3: memref<4x32x8xbf16, #tpu.memory_space<vmem>>, %arg4: memref<4x32x8xbf16, #tpu.memory_space<vmem>>, %arg5: memref<4x1x8xf32, #tpu.memory_space<vmem>>, %arg6: memref<4x1x8xf32, #tpu.memory_space<vmem>>, %arg7: memref<4x1x8xf32, #tpu.memory_space<vmem>>, %arg8: memref<4x8x128xbf16, #tpu.memory_space<vmem>>, %arg9: memref<1x128xf32, #tpu.memory_space<vmem>>, %arg10: memref<16x128xf32, #tpu.memory_space<vmem>>) attributes {dimension_semantics = [#tpu.dimension_semantics<arbitrary>], iteration_bounds = array<i64: 1>, scalar_prefetch = 0 : i64, scratch_operands = 0 : i64, tpu.core_type = #tpu.core_type<tc>, window_params = [{pipeline_mode = #tpu.pipeline_mode<synchronous>, transform_indices = @transform_0, window_bounds = array<i64: 16, 32>}, {pipeline_mode = #tpu.pipeline_mode<synchronous>, transform_indices = @transform_1, window_bounds = array<i64: 4, 32, 8>}, {pipeline_mode = #tpu.pipeline_mode<synchronous>, transform_indices = @transform_2, window_bounds = array<i64: 4, 32, 8>}, {pipeline_mode = #tpu.pipeline_mode<synchronous>, transform_indices = @transform_3, window_bounds = array<i64: 4, 32, 8>}, {pipeline_mode = #tpu.pipeline_mode<synchronous>, transform_indices = @transform_4, window_bounds = array<i64: 4, 1, 8>}, {pipeline_mode = #tpu.pipeline_mode<synchronous>, transform_indices = @transform_5, window_bounds = array<i64: 4, 1, 8>}, {pipeline_mode = #tpu.pipeline_mode<synchronous>, transform_indices = @transform_6, window_bounds = array<i64: 4, 1, 8>}, {pipeline_mode = #tpu.pipeline_mode<synchronous>, transform_indices = @transform_7, window_bounds = array<i64: 4, 8, 128>}, {pipeline_mode = #tpu.pipeline_mode<synchronous>, transform_indices = @transform_8, window_bounds = array<i64: 1, 128>}, {pipeline_mode = #tpu.pipeline_mode<synchronous>, transform_indices = @transform_9, window_bounds = array<i64: 16, 128>}]} {
    %c0 = arith.constant 0 : index
    %c0_0 = arith.constant 0 : index
    %0 = vector.load %arg1[%c0, %c0_0] : memref<16x32xbf16, #tpu.memory_space<vmem>>, vector<16x32xbf16>
    %1 = tpu.iota {dimensions = array<i32: 0>} : vector<8x8xi32>
    %2 = tpu.iota {dimensions = array<i32: 1>} : vector<8x8xi32>
    %3 = arith.cmpi sge, %1, %2 : vector<8x8xi32>
    %cst = arith.constant 0.000000e+00 : f32
    %cst_1 = arith.constant -1.000000e+30 : f32
    %4 = vector.broadcast %cst : f32 to vector<8x8xf32>
    %5 = vector.broadcast %cst_1 : f32 to vector<8x8xf32>
    %6 = arith.select %3, %4, %5 : vector<8x8xi1>, vector<8x8xf32>
    %cst_2 = arith.constant 0.000000e+00 : f32
    %7 = vector.broadcast %cst_2 : f32 to vector<16x128xf32>
    %c0_3 = arith.constant 0 : index
    %c0_4 = arith.constant 0 : index
    %c0_5 = arith.constant 0 : index
    %8 = vector.load %arg2[%c0_3, %c0_4, %c0_5] : memref<4x32x8xbf16, #tpu.memory_space<vmem>>, vector<1x32x8xbf16>
    %9 = vector.shape_cast %8 : vector<1x32x8xbf16> to vector<32x8xbf16>
    %cst_6 = arith.constant dense<0.000000e+00> : vector<16x8xf32>
    %10 = tpu.matmul %0, %9, %cst_6 {dimension_numbers = #tpu.dot_dimension_numbers<[1], [0], [0], [1], [0, 0, 1, 1], [], []>} : vector<16x32xbf16>, vector<32x8xbf16>, vector<16x8xf32> -> vector<16x8xf32>
    %c0_7 = arith.constant 0 : index
    %c0_8 = arith.constant 0 : index
    %c0_9 = arith.constant 0 : index
    %11 = vector.load %arg5[%c0_7, %c0_8, %c0_9] : memref<4x1x8xf32, #tpu.memory_space<vmem>>, vector<1x1x8xf32>
    %12 = vector.shape_cast %11 : vector<1x1x8xf32> to vector<1x8xf32>
    %13 = vector.broadcast %12 : vector<1x8xf32> to vector<16x8xf32>
    %14 = arith.addf %10, %13 : vector<16x8xf32>
    %c0_10 = arith.constant 0 : index
    %c0_11 = arith.constant 0 : index
    %c0_12 = arith.constant 0 : index
    %15 = vector.load %arg3[%c0_10, %c0_11, %c0_12] : memref<4x32x8xbf16, #tpu.memory_space<vmem>>, vector<1x32x8xbf16>
    %16 = vector.shape_cast %15 : vector<1x32x8xbf16> to vector<32x8xbf16>
    %cst_13 = arith.constant dense<0.000000e+00> : vector<16x8xf32>
    %17 = tpu.matmul %0, %16, %cst_13 {dimension_numbers = #tpu.dot_dimension_numbers<[1], [0], [0], [1], [0, 0, 1, 1], [], []>} : vector<16x32xbf16>, vector<32x8xbf16>, vector<16x8xf32> -> vector<16x8xf32>
    %c0_14 = arith.constant 0 : index
    %c0_15 = arith.constant 0 : index
    %c0_16 = arith.constant 0 : index
    %18 = vector.load %arg6[%c0_14, %c0_15, %c0_16] : memref<4x1x8xf32, #tpu.memory_space<vmem>>, vector<1x1x8xf32>
    %19 = vector.shape_cast %18 : vector<1x1x8xf32> to vector<1x8xf32>
    %20 = vector.broadcast %19 : vector<1x8xf32> to vector<16x8xf32>
    %21 = arith.addf %17, %20 : vector<16x8xf32>
    %c0_17 = arith.constant 0 : index
    %c0_18 = arith.constant 0 : index
    %c0_19 = arith.constant 0 : index
    %22 = vector.load %arg4[%c0_17, %c0_18, %c0_19] : memref<4x32x8xbf16, #tpu.memory_space<vmem>>, vector<1x32x8xbf16>
    %23 = vector.shape_cast %22 : vector<1x32x8xbf16> to vector<32x8xbf16>
    %cst_20 = arith.constant dense<0.000000e+00> : vector<16x8xf32>
    %24 = tpu.matmul %0, %23, %cst_20 {dimension_numbers = #tpu.dot_dimension_numbers<[1], [0], [0], [1], [0, 0, 1, 1], [], []>} : vector<16x32xbf16>, vector<32x8xbf16>, vector<16x8xf32> -> vector<16x8xf32>
    %c0_21 = arith.constant 0 : index
    %c0_22 = arith.constant 0 : index
    %c0_23 = arith.constant 0 : index
    %25 = vector.load %arg7[%c0_21, %c0_22, %c0_23] : memref<4x1x8xf32, #tpu.memory_space<vmem>>, vector<1x1x8xf32>
    %26 = vector.shape_cast %25 : vector<1x1x8xf32> to vector<1x8xf32>
    %27 = vector.broadcast %26 : vector<1x8xf32> to vector<16x8xf32>
    %28 = arith.addf %24, %27 : vector<16x8xf32>
    %29 = vector.shape_cast %14 : vector<16x8xf32> to vector<2x8x8xf32>
    %30 = arith.truncf %29 : vector<2x8x8xf32> to vector<2x8x8xbf16>
    %31 = vector.shape_cast %21 : vector<16x8xf32> to vector<2x8x8xf32>
    %32 = arith.truncf %31 : vector<2x8x8xf32> to vector<2x8x8xbf16>
    %33 = vector.shape_cast %28 : vector<16x8xf32> to vector<2x8x8xf32>
    %34 = arith.truncf %33 : vector<2x8x8xf32> to vector<2x8x8xbf16>
    "tpu.trace_start"() <{level = 10 : i32, message = "bqd,bkd->bqk"}> : () -> ()
    %cst_24 = arith.constant dense<0.000000e+00> : vector<2x8x8xf32>
    %35 = tpu.matmul %30, %32, %cst_24 {dimension_numbers = #tpu.dot_dimension_numbers<[2], [2], [1], [1], [0, 0, 0, 1, 1, 1], [0], [0]>} : vector<2x8x8xbf16>, vector<2x8x8xbf16>, vector<2x8x8xf32> -> vector<2x8x8xf32>
    "tpu.trace_stop"() : () -> ()
    %36 = vector.shape_cast %6 : vector<8x8xf32> to vector<1x8x8xf32>
    %37 = vector.broadcast %36 : vector<1x8x8xf32> to vector<2x8x8xf32>
    %38 = arith.addf %35, %37 : vector<2x8x8xf32>
    %cst_25 = arith.constant dense<0xFF800000> : vector<2x8xf32>
    %39 = vector.multi_reduction <maximumf>, %38, %cst_25 [2] : vector<2x8x8xf32> to vector<2x8xf32>
    %40 = vector.shape_cast %39 : vector<2x8xf32> to vector<2x8x1xf32>
    %41 = vector.broadcast %40 : vector<2x8x1xf32> to vector<2x8x8xf32>
    %42 = arith.subf %38, %41 : vector<2x8x8xf32>
    %43 = math.exp %42 : vector<2x8x8xf32>
    %cst_26 = arith.constant dense<0.000000e+00> : vector<2x8xf32>
    %44 = vector.multi_reduction <add>, %43, %cst_26 [2] : vector<2x8x8xf32> to vector<2x8xf32>
    %45 = vector.shape_cast %44 : vector<2x8xf32> to vector<2x8x1xf32>
    %46 = tpu.reciprocal %45 {approx = true} : vector<2x8x1xf32> -> vector<2x8x1xf32>
    %47 = vector.broadcast %46 : vector<2x8x1xf32> to vector<2x8x8xf32>
    %48 = arith.mulf %43, %47 : vector<2x8x8xf32>
    %49 = arith.truncf %48 : vector<2x8x8xf32> to vector<2x8x8xbf16>
    "tpu.trace_start"() <{level = 10 : i32, message = "bqk,bkd->bqd"}> : () -> ()
    %cst_27 = arith.constant dense<0.000000e+00> : vector<2x8x8xf32>
    %50 = tpu.matmul %49, %34, %cst_27 {dimension_numbers = #tpu.dot_dimension_numbers<[2], [1], [1], [2], [0, 0, 0, 1, 1, 2], [0], [0]>} : vector<2x8x8xbf16>, vector<2x8x8xbf16>, vector<2x8x8xf32> -> vector<2x8x8xf32>
    "tpu.trace_stop"() : () -> ()
    %51 = vector.shape_cast %50 : vector<2x8x8xf32> to vector<16x8xf32>
    %52 = arith.truncf %51 : vector<16x8xf32> to vector<16x8xbf16>
    %c0_28 = arith.constant 0 : index
    %c0_29 = arith.constant 0 : index
    %c0_30 = arith.constant 0 : index
    %53 = vector.load %arg8[%c0_28, %c0_29, %c0_30] : memref<4x8x128xbf16, #tpu.memory_space<vmem>>, vector<1x8x128xbf16>
    %54 = vector.shape_cast %53 : vector<1x8x128xbf16> to vector<8x128xbf16>
    %cst_31 = arith.constant dense<0.000000e+00> : vector<16x128xf32>
    %55 = tpu.matmul %52, %54, %cst_31 {dimension_numbers = #tpu.dot_dimension_numbers<[1], [0], [0], [1], [0, 0, 1, 1], [], []>} : vector<16x8xbf16>, vector<8x128xbf16>, vector<16x128xf32> -> vector<16x128xf32>
    %56 = arith.addf %7, %55 : vector<16x128xf32>
    %c1 = arith.constant 1 : index
    %c0_32 = arith.constant 0 : index
    %c0_33 = arith.constant 0 : index
    %57 = vector.load %arg2[%c1, %c0_32, %c0_33] : memref<4x32x8xbf16, #tpu.memory_space<vmem>>, vector<1x32x8xbf16>
    %58 = vector.shape_cast %57 : vector<1x32x8xbf16> to vector<32x8xbf16>
    %cst_34 = arith.constant dense<0.000000e+00> : vector<16x8xf32>
    %59 = tpu.matmul %0, %58, %cst_34 {dimension_numbers = #tpu.dot_dimension_numbers<[1], [0], [0], [1], [0, 0, 1, 1], [], []>} : vector<16x32xbf16>, vector<32x8xbf16>, vector<16x8xf32> -> vector<16x8xf32>
    %c1_35 = arith.constant 1 : index
    %c0_36 = arith.constant 0 : index
    %c0_37 = arith.constant 0 : index
    %60 = vector.load %arg5[%c1_35, %c0_36, %c0_37] : memref<4x1x8xf32, #tpu.memory_space<vmem>>, vector<1x1x8xf32>
    %61 = vector.shape_cast %60 : vector<1x1x8xf32> to vector<1x8xf32>
    %62 = vector.broadcast %61 : vector<1x8xf32> to vector<16x8xf32>
    %63 = arith.addf %59, %62 : vector<16x8xf32>
    %c1_38 = arith.constant 1 : index
    %c0_39 = arith.constant 0 : index
    %c0_40 = arith.constant 0 : index
    %64 = vector.load %arg3[%c1_38, %c0_39, %c0_40] : memref<4x32x8xbf16, #tpu.memory_space<vmem>>, vector<1x32x8xbf16>
    %65 = vector.shape_cast %64 : vector<1x32x8xbf16> to vector<32x8xbf16>
    %cst_41 = arith.constant dense<0.000000e+00> : vector<16x8xf32>
    %66 = tpu.matmul %0, %65, %cst_41 {dimension_numbers = #tpu.dot_dimension_numbers<[1], [0], [0], [1], [0, 0, 1, 1], [], []>} : vector<16x32xbf16>, vector<32x8xbf16>, vector<16x8xf32> -> vector<16x8xf32>
    %c1_42 = arith.constant 1 : index
    %c0_43 = arith.constant 0 : index
    %c0_44 = arith.constant 0 : index
    %67 = vector.load %arg6[%c1_42, %c0_43, %c0_44] : memref<4x1x8xf32, #tpu.memory_space<vmem>>, vector<1x1x8xf32>
    %68 = vector.shape_cast %67 : vector<1x1x8xf32> to vector<1x8xf32>
    %69 = vector.broadcast %68 : vector<1x8xf32> to vector<16x8xf32>
    %70 = arith.addf %66, %69 : vector<16x8xf32>
    %c1_45 = arith.constant 1 : index
    %c0_46 = arith.constant 0 : index
    %c0_47 = arith.constant 0 : index
    %71 = vector.load %arg4[%c1_45, %c0_46, %c0_47] : memref<4x32x8xbf16, #tpu.memory_space<vmem>>, vector<1x32x8xbf16>
    %72 = vector.shape_cast %71 : vector<1x32x8xbf16> to vector<32x8xbf16>
    %cst_48 = arith.constant dense<0.000000e+00> : vector<16x8xf32>
    %73 = tpu.matmul %0, %72, %cst_48 {dimension_numbers = #tpu.dot_dimension_numbers<[1], [0], [0], [1], [0, 0, 1, 1], [], []>} : vector<16x32xbf16>, vector<32x8xbf16>, vector<16x8xf32> -> vector<16x8xf32>
    %c1_49 = arith.constant 1 : index
    %c0_50 = arith.constant 0 : index
    %c0_51 = arith.constant 0 : index
    %74 = vector.load %arg7[%c1_49, %c0_50, %c0_51] : memref<4x1x8xf32, #tpu.memory_space<vmem>>, vector<1x1x8xf32>
    %75 = vector.shape_cast %74 : vector<1x1x8xf32> to vector<1x8xf32>
    %76 = vector.broadcast %75 : vector<1x8xf32> to vector<16x8xf32>
    %77 = arith.addf %73, %76 : vector<16x8xf32>
    %78 = vector.shape_cast %63 : vector<16x8xf32> to vector<2x8x8xf32>
    %79 = arith.truncf %78 : vector<2x8x8xf32> to vector<2x8x8xbf16>
    %80 = vector.shape_cast %70 : vector<16x8xf32> to vector<2x8x8xf32>
    %81 = arith.truncf %80 : vector<2x8x8xf32> to vector<2x8x8xbf16>
    %82 = vector.shape_cast %77 : vector<16x8xf32> to vector<2x8x8xf32>
    %83 = arith.truncf %82 : vector<2x8x8xf32> to vector<2x8x8xbf16>
    "tpu.trace_start"() <{level = 10 : i32, message = "bqd,bkd->bqk"}> : () -> ()
    %cst_52 = arith.constant dense<0.000000e+00> : vector<2x8x8xf32>
    %84 = tpu.matmul %79, %81, %cst_52 {dimension_numbers = #tpu.dot_dimension_numbers<[2], [2], [1], [1], [0, 0, 0, 1, 1, 1], [0], [0]>} : vector<2x8x8xbf16>, vector<2x8x8xbf16>, vector<2x8x8xf32> -> vector<2x8x8xf32>
    "tpu.trace_stop"() : () -> ()
    %85 = vector.shape_cast %6 : vector<8x8xf32> to vector<1x8x8xf32>
    %86 = vector.broadcast %85 : vector<1x8x8xf32> to vector<2x8x8xf32>
    %87 = arith.addf %84, %86 : vector<2x8x8xf32>
    %cst_53 = arith.constant dense<0xFF800000> : vector<2x8xf32>
    %88 = vector.multi_reduction <maximumf>, %87, %cst_53 [2] : vector<2x8x8xf32> to vector<2x8xf32>
    %89 = vector.shape_cast %88 : vector<2x8xf32> to vector<2x8x1xf32>
    %90 = vector.broadcast %89 : vector<2x8x1xf32> to vector<2x8x8xf32>
    %91 = arith.subf %87, %90 : vector<2x8x8xf32>
    %92 = math.exp %91 : vector<2x8x8xf32>
    %cst_54 = arith.constant dense<0.000000e+00> : vector<2x8xf32>
    %93 = vector.multi_reduction <add>, %92, %cst_54 [2] : vector<2x8x8xf32> to vector<2x8xf32>
    %94 = vector.shape_cast %93 : vector<2x8xf32> to vector<2x8x1xf32>
    %95 = tpu.reciprocal %94 {approx = true} : vector<2x8x1xf32> -> vector<2x8x1xf32>
    %96 = vector.broadcast %95 : vector<2x8x1xf32> to vector<2x8x8xf32>
    %97 = arith.mulf %92, %96 : vector<2x8x8xf32>
    %98 = arith.truncf %97 : vector<2x8x8xf32> to vector<2x8x8xbf16>
    "tpu.trace_start"() <{level = 10 : i32, message = "bqk,bkd->bqd"}> : () -> ()
    %cst_55 = arith.constant dense<0.000000e+00> : vector<2x8x8xf32>
    %99 = tpu.matmul %98, %83, %cst_55 {dimension_numbers = #tpu.dot_dimension_numbers<[2], [1], [1], [2], [0, 0, 0, 1, 1, 2], [0], [0]>} : vector<2x8x8xbf16>, vector<2x8x8xbf16>, vector<2x8x8xf32> -> vector<2x8x8xf32>
    "tpu.trace_stop"() : () -> ()
    %100 = vector.shape_cast %99 : vector<2x8x8xf32> to vector<16x8xf32>
    %101 = arith.truncf %100 : vector<16x8xf32> to vector<16x8xbf16>
    %c1_56 = arith.constant 1 : index
    %c0_57 = arith.constant 0 : index
    %c0_58 = arith.constant 0 : index
    %102 = vector.load %arg8[%c1_56, %c0_57, %c0_58] : memref<4x8x128xbf16, #tpu.memory_space<vmem>>, vector<1x8x128xbf16>
    %103 = vector.shape_cast %102 : vector<1x8x128xbf16> to vector<8x128xbf16>
    %cst_59 = arith.constant dense<0.000000e+00> : vector<16x128xf32>
    %104 = tpu.matmul %101, %103, %cst_59 {dimension_numbers = #tpu.dot_dimension_numbers<[1], [0], [0], [1], [0, 0, 1, 1], [], []>} : vector<16x8xbf16>, vector<8x128xbf16>, vector<16x128xf32> -> vector<16x128xf32>
    %105 = arith.addf %56, %104 : vector<16x128xf32>
    %c2 = arith.constant 2 : index
    %c0_60 = arith.constant 0 : index
    %c0_61 = arith.constant 0 : index
    %106 = vector.load %arg2[%c2, %c0_60, %c0_61] : memref<4x32x8xbf16, #tpu.memory_space<vmem>>, vector<1x32x8xbf16>
    %107 = vector.shape_cast %106 : vector<1x32x8xbf16> to vector<32x8xbf16>
    %cst_62 = arith.constant dense<0.000000e+00> : vector<16x8xf32>
    %108 = tpu.matmul %0, %107, %cst_62 {dimension_numbers = #tpu.dot_dimension_numbers<[1], [0], [0], [1], [0, 0, 1, 1], [], []>} : vector<16x32xbf16>, vector<32x8xbf16>, vector<16x8xf32> -> vector<16x8xf32>
    %c2_63 = arith.constant 2 : index
    %c0_64 = arith.constant 0 : index
    %c0_65 = arith.constant 0 : index
    %109 = vector.load %arg5[%c2_63, %c0_64, %c0_65] : memref<4x1x8xf32, #tpu.memory_space<vmem>>, vector<1x1x8xf32>
    %110 = vector.shape_cast %109 : vector<1x1x8xf32> to vector<1x8xf32>
    %111 = vector.broadcast %110 : vector<1x8xf32> to vector<16x8xf32>
    %112 = arith.addf %108, %111 : vector<16x8xf32>
    %c2_66 = arith.constant 2 : index
    %c0_67 = arith.constant 0 : index
    %c0_68 = arith.constant 0 : index
    %113 = vector.load %arg3[%c2_66, %c0_67, %c0_68] : memref<4x32x8xbf16, #tpu.memory_space<vmem>>, vector<1x32x8xbf16>
    %114 = vector.shape_cast %113 : vector<1x32x8xbf16> to vector<32x8xbf16>
    %cst_69 = arith.constant dense<0.000000e+00> : vector<16x8xf32>
    %115 = tpu.matmul %0, %114, %cst_69 {dimension_numbers = #tpu.dot_dimension_numbers<[1], [0], [0], [1], [0, 0, 1, 1], [], []>} : vector<16x32xbf16>, vector<32x8xbf16>, vector<16x8xf32> -> vector<16x8xf32>
    %c2_70 = arith.constant 2 : index
    %c0_71 = arith.constant 0 : index
    %c0_72 = arith.constant 0 : index
    %116 = vector.load %arg6[%c2_70, %c0_71, %c0_72] : memref<4x1x8xf32, #tpu.memory_space<vmem>>, vector<1x1x8xf32>
    %117 = vector.shape_cast %116 : vector<1x1x8xf32> to vector<1x8xf32>
    %118 = vector.broadcast %117 : vector<1x8xf32> to vector<16x8xf32>
    %119 = arith.addf %115, %118 : vector<16x8xf32>
    %c2_73 = arith.constant 2 : index
    %c0_74 = arith.constant 0 : index
    %c0_75 = arith.constant 0 : index
    %120 = vector.load %arg4[%c2_73, %c0_74, %c0_75] : memref<4x32x8xbf16, #tpu.memory_space<vmem>>, vector<1x32x8xbf16>
    %121 = vector.shape_cast %120 : vector<1x32x8xbf16> to vector<32x8xbf16>
    %cst_76 = arith.constant dense<0.000000e+00> : vector<16x8xf32>
    %122 = tpu.matmul %0, %121, %cst_76 {dimension_numbers = #tpu.dot_dimension_numbers<[1], [0], [0], [1], [0, 0, 1, 1], [], []>} : vector<16x32xbf16>, vector<32x8xbf16>, vector<16x8xf32> -> vector<16x8xf32>
    %c2_77 = arith.constant 2 : index
    %c0_78 = arith.constant 0 : index
    %c0_79 = arith.constant 0 : index
    %123 = vector.load %arg7[%c2_77, %c0_78, %c0_79] : memref<4x1x8xf32, #tpu.memory_space<vmem>>, vector<1x1x8xf32>
    %124 = vector.shape_cast %123 : vector<1x1x8xf32> to vector<1x8xf32>
    %125 = vector.broadcast %124 : vector<1x8xf32> to vector<16x8xf32>
    %126 = arith.addf %122, %125 : vector<16x8xf32>
    %127 = vector.shape_cast %112 : vector<16x8xf32> to vector<2x8x8xf32>
    %128 = arith.truncf %127 : vector<2x8x8xf32> to vector<2x8x8xbf16>
    %129 = vector.shape_cast %119 : vector<16x8xf32> to vector<2x8x8xf32>
    %130 = arith.truncf %129 : vector<2x8x8xf32> to vector<2x8x8xbf16>
    %131 = vector.shape_cast %126 : vector<16x8xf32> to vector<2x8x8xf32>
    %132 = arith.truncf %131 : vector<2x8x8xf32> to vector<2x8x8xbf16>
    "tpu.trace_start"() <{level = 10 : i32, message = "bqd,bkd->bqk"}> : () -> ()
    %cst_80 = arith.constant dense<0.000000e+00> : vector<2x8x8xf32>
    %133 = tpu.matmul %128, %130, %cst_80 {dimension_numbers = #tpu.dot_dimension_numbers<[2], [2], [1], [1], [0, 0, 0, 1, 1, 1], [0], [0]>} : vector<2x8x8xbf16>, vector<2x8x8xbf16>, vector<2x8x8xf32> -> vector<2x8x8xf32>
    "tpu.trace_stop"() : () -> ()
    %134 = vector.shape_cast %6 : vector<8x8xf32> to vector<1x8x8xf32>
    %135 = vector.broadcast %134 : vector<1x8x8xf32> to vector<2x8x8xf32>
    %136 = arith.addf %133, %135 : vector<2x8x8xf32>
    %cst_81 = arith.constant dense<0xFF800000> : vector<2x8xf32>
    %137 = vector.multi_reduction <maximumf>, %136, %cst_81 [2] : vector<2x8x8xf32> to vector<2x8xf32>
    %138 = vector.shape_cast %137 : vector<2x8xf32> to vector<2x8x1xf32>
    %139 = vector.broadcast %138 : vector<2x8x1xf32> to vector<2x8x8xf32>
    %140 = arith.subf %136, %139 : vector<2x8x8xf32>
    %141 = math.exp %140 : vector<2x8x8xf32>
    %cst_82 = arith.constant dense<0.000000e+00> : vector<2x8xf32>
    %142 = vector.multi_reduction <add>, %141, %cst_82 [2] : vector<2x8x8xf32> to vector<2x8xf32>
    %143 = vector.shape_cast %142 : vector<2x8xf32> to vector<2x8x1xf32>
    %144 = tpu.reciprocal %143 {approx = true} : vector<2x8x1xf32> -> vector<2x8x1xf32>
    %145 = vector.broadcast %144 : vector<2x8x1xf32> to vector<2x8x8xf32>
    %146 = arith.mulf %141, %145 : vector<2x8x8xf32>
    %147 = arith.truncf %146 : vector<2x8x8xf32> to vector<2x8x8xbf16>
    "tpu.trace_start"() <{level = 10 : i32, message = "bqk,bkd->bqd"}> : () -> ()
    %cst_83 = arith.constant dense<0.000000e+00> : vector<2x8x8xf32>
    %148 = tpu.matmul %147, %132, %cst_83 {dimension_numbers = #tpu.dot_dimension_numbers<[2], [1], [1], [2], [0, 0, 0, 1, 1, 2], [0], [0]>} : vector<2x8x8xbf16>, vector<2x8x8xbf16>, vector<2x8x8xf32> -> vector<2x8x8xf32>
    "tpu.trace_stop"() : () -> ()
    %149 = vector.shape_cast %148 : vector<2x8x8xf32> to vector<16x8xf32>
    %150 = arith.truncf %149 : vector<16x8xf32> to vector<16x8xbf16>
    %c2_84 = arith.constant 2 : index
    %c0_85 = arith.constant 0 : index
    %c0_86 = arith.constant 0 : index
    %151 = vector.load %arg8[%c2_84, %c0_85, %c0_86] : memref<4x8x128xbf16, #tpu.memory_space<vmem>>, vector<1x8x128xbf16>
    %152 = vector.shape_cast %151 : vector<1x8x128xbf16> to vector<8x128xbf16>
    %cst_87 = arith.constant dense<0.000000e+00> : vector<16x128xf32>
    %153 = tpu.matmul %150, %152, %cst_87 {dimension_numbers = #tpu.dot_dimension_numbers<[1], [0], [0], [1], [0, 0, 1, 1], [], []>} : vector<16x8xbf16>, vector<8x128xbf16>, vector<16x128xf32> -> vector<16x128xf32>
    %154 = arith.addf %105, %153 : vector<16x128xf32>
    %c3 = arith.constant 3 : index
    %c0_88 = arith.constant 0 : index
    %c0_89 = arith.constant 0 : index
    %155 = vector.load %arg2[%c3, %c0_88, %c0_89] : memref<4x32x8xbf16, #tpu.memory_space<vmem>>, vector<1x32x8xbf16>
    %156 = vector.shape_cast %155 : vector<1x32x8xbf16> to vector<32x8xbf16>
    %cst_90 = arith.constant dense<0.000000e+00> : vector<16x8xf32>
    %157 = tpu.matmul %0, %156, %cst_90 {dimension_numbers = #tpu.dot_dimension_numbers<[1], [0], [0], [1], [0, 0, 1, 1], [], []>} : vector<16x32xbf16>, vector<32x8xbf16>, vector<16x8xf32> -> vector<16x8xf32>
    %c3_91 = arith.constant 3 : index
    %c0_92 = arith.constant 0 : index
    %c0_93 = arith.constant 0 : index
    %158 = vector.load %arg5[%c3_91, %c0_92, %c0_93] : memref<4x1x8xf32, #tpu.memory_space<vmem>>, vector<1x1x8xf32>
    %159 = vector.shape_cast %158 : vector<1x1x8xf32> to vector<1x8xf32>
    %160 = vector.broadcast %159 : vector<1x8xf32> to vector<16x8xf32>
    %161 = arith.addf %157, %160 : vector<16x8xf32>
    %c3_94 = arith.constant 3 : index
    %c0_95 = arith.constant 0 : index
    %c0_96 = arith.constant 0 : index
    %162 = vector.load %arg3[%c3_94, %c0_95, %c0_96] : memref<4x32x8xbf16, #tpu.memory_space<vmem>>, vector<1x32x8xbf16>
    %163 = vector.shape_cast %162 : vector<1x32x8xbf16> to vector<32x8xbf16>
    %cst_97 = arith.constant dense<0.000000e+00> : vector<16x8xf32>
    %164 = tpu.matmul %0, %163, %cst_97 {dimension_numbers = #tpu.dot_dimension_numbers<[1], [0], [0], [1], [0, 0, 1, 1], [], []>} : vector<16x32xbf16>, vector<32x8xbf16>, vector<16x8xf32> -> vector<16x8xf32>
    %c3_98 = arith.constant 3 : index
    %c0_99 = arith.constant 0 : index
    %c0_100 = arith.constant 0 : index
    %165 = vector.load %arg6[%c3_98, %c0_99, %c0_100] : memref<4x1x8xf32, #tpu.memory_space<vmem>>, vector<1x1x8xf32>
    %166 = vector.shape_cast %165 : vector<1x1x8xf32> to vector<1x8xf32>
    %167 = vector.broadcast %166 : vector<1x8xf32> to vector<16x8xf32>
    %168 = arith.addf %164, %167 : vector<16x8xf32>
    %c3_101 = arith.constant 3 : index
    %c0_102 = arith.constant 0 : index
    %c0_103 = arith.constant 0 : index
    %169 = vector.load %arg4[%c3_101, %c0_102, %c0_103] : memref<4x32x8xbf16, #tpu.memory_space<vmem>>, vector<1x32x8xbf16>
    %170 = vector.shape_cast %169 : vector<1x32x8xbf16> to vector<32x8xbf16>
    %cst_104 = arith.constant dense<0.000000e+00> : vector<16x8xf32>
    %171 = tpu.matmul %0, %170, %cst_104 {dimension_numbers = #tpu.dot_dimension_numbers<[1], [0], [0], [1], [0, 0, 1, 1], [], []>} : vector<16x32xbf16>, vector<32x8xbf16>, vector<16x8xf32> -> vector<16x8xf32>
    %c3_105 = arith.constant 3 : index
    %c0_106 = arith.constant 0 : index
    %c0_107 = arith.constant 0 : index
    %172 = vector.load %arg7[%c3_105, %c0_106, %c0_107] : memref<4x1x8xf32, #tpu.memory_space<vmem>>, vector<1x1x8xf32>
    %173 = vector.shape_cast %172 : vector<1x1x8xf32> to vector<1x8xf32>
    %174 = vector.broadcast %173 : vector<1x8xf32> to vector<16x8xf32>
    %175 = arith.addf %171, %174 : vector<16x8xf32>
    %176 = vector.shape_cast %161 : vector<16x8xf32> to vector<2x8x8xf32>
    %177 = arith.truncf %176 : vector<2x8x8xf32> to vector<2x8x8xbf16>
    %178 = vector.shape_cast %168 : vector<16x8xf32> to vector<2x8x8xf32>
    %179 = arith.truncf %178 : vector<2x8x8xf32> to vector<2x8x8xbf16>
    %180 = vector.shape_cast %175 : vector<16x8xf32> to vector<2x8x8xf32>
    %181 = arith.truncf %180 : vector<2x8x8xf32> to vector<2x8x8xbf16>
    "tpu.trace_start"() <{level = 10 : i32, message = "bqd,bkd->bqk"}> : () -> ()
    %cst_108 = arith.constant dense<0.000000e+00> : vector<2x8x8xf32>
    %182 = tpu.matmul %177, %179, %cst_108 {dimension_numbers = #tpu.dot_dimension_numbers<[2], [2], [1], [1], [0, 0, 0, 1, 1, 1], [0], [0]>} : vector<2x8x8xbf16>, vector<2x8x8xbf16>, vector<2x8x8xf32> -> vector<2x8x8xf32>
    "tpu.trace_stop"() : () -> ()
    %183 = vector.shape_cast %6 : vector<8x8xf32> to vector<1x8x8xf32>
    %184 = vector.broadcast %183 : vector<1x8x8xf32> to vector<2x8x8xf32>
    %185 = arith.addf %182, %184 : vector<2x8x8xf32>
    %cst_109 = arith.constant dense<0xFF800000> : vector<2x8xf32>
    %186 = vector.multi_reduction <maximumf>, %185, %cst_109 [2] : vector<2x8x8xf32> to vector<2x8xf32>
    %187 = vector.shape_cast %186 : vector<2x8xf32> to vector<2x8x1xf32>
    %188 = vector.broadcast %187 : vector<2x8x1xf32> to vector<2x8x8xf32>
    %189 = arith.subf %185, %188 : vector<2x8x8xf32>
    %190 = math.exp %189 : vector<2x8x8xf32>
    %cst_110 = arith.constant dense<0.000000e+00> : vector<2x8xf32>
    %191 = vector.multi_reduction <add>, %190, %cst_110 [2] : vector<2x8x8xf32> to vector<2x8xf32>
    %192 = vector.shape_cast %191 : vector<2x8xf32> to vector<2x8x1xf32>
    %193 = tpu.reciprocal %192 {approx = true} : vector<2x8x1xf32> -> vector<2x8x1xf32>
    %194 = vector.broadcast %193 : vector<2x8x1xf32> to vector<2x8x8xf32>
    %195 = arith.mulf %190, %194 : vector<2x8x8xf32>
    %196 = arith.truncf %195 : vector<2x8x8xf32> to vector<2x8x8xbf16>
    "tpu.trace_start"() <{level = 10 : i32, message = "bqk,bkd->bqd"}> : () -> ()
    %cst_111 = arith.constant dense<0.000000e+00> : vector<2x8x8xf32>
    %197 = tpu.matmul %196, %181, %cst_111 {dimension_numbers = #tpu.dot_dimension_numbers<[2], [1], [1], [2], [0, 0, 0, 1, 1, 2], [0], [0]>} : vector<2x8x8xbf16>, vector<2x8x8xbf16>, vector<2x8x8xf32> -> vector<2x8x8xf32>
    "tpu.trace_stop"() : () -> ()
    %198 = vector.shape_cast %197 : vector<2x8x8xf32> to vector<16x8xf32>
    %199 = arith.truncf %198 : vector<16x8xf32> to vector<16x8xbf16>
    %c3_112 = arith.constant 3 : index
    %c0_113 = arith.constant 0 : index
    %c0_114 = arith.constant 0 : index
    %200 = vector.load %arg8[%c3_112, %c0_113, %c0_114] : memref<4x8x128xbf16, #tpu.memory_space<vmem>>, vector<1x8x128xbf16>
    %201 = vector.shape_cast %200 : vector<1x8x128xbf16> to vector<8x128xbf16>
    %cst_115 = arith.constant dense<0.000000e+00> : vector<16x128xf32>
    %202 = tpu.matmul %199, %201, %cst_115 {dimension_numbers = #tpu.dot_dimension_numbers<[1], [0], [0], [1], [0, 0, 1, 1], [], []>} : vector<16x8xbf16>, vector<8x128xbf16>, vector<16x128xf32> -> vector<16x128xf32>
    %203 = arith.addf %154, %202 : vector<16x128xf32>
    %c0_116 = arith.constant 0 : index
    %c0_117 = arith.constant 0 : index
    %204 = vector.load %arg9[%c0_116, %c0_117] : memref<1x128xf32, #tpu.memory_space<vmem>>, vector<1x128xf32>
    %205 = vector.broadcast %204 : vector<1x128xf32> to vector<16x128xf32>
    %206 = arith.addf %203, %205 : vector<16x128xf32>
    %c0_118 = arith.constant 0 : index
    %c0_119 = arith.constant 0 : index
    %207 = vector.load %arg10[%c0_118, %c0_119] : memref<16x128xf32, #tpu.memory_space<vmem>>, vector<16x128xf32>
    tpu.vector_store %arg10[%c0_118, %c0_119], %206 {strides = array<i32>} : memref<16x128xf32, #tpu.memory_space<vmem>>, vector<16x128xf32>,
    return
  }
  func.func @transform_0(%arg0: i32) -> (i32, i32) {
    %c0_i32 = arith.constant 0 : i32
    %c0_i32_0 = arith.constant 0 : i32
    %c0_i32_1 = arith.constant 0 : i32
    return %c0_i32, %c0_i32_0 : i32, i32
  }
  func.func @transform_1(%arg0: i32) -> (i32, i32, i32) {
    %c0_i32 = arith.constant 0 : i32
    %c0_i32_0 = arith.constant 0 : i32
    %c0_i32_1 = arith.constant 0 : i32
    %c0_i32_2 = arith.constant 0 : i32
    return %c0_i32, %c0_i32_0, %c0_i32_1 : i32, i32, i32
  }
  func.func @transform_2(%arg0: i32) -> (i32, i32, i32) {
    %c0_i32 = arith.constant 0 : i32
    %c0_i32_0 = arith.constant 0 : i32
    %c0_i32_1 = arith.constant 0 : i32
    %c0_i32_2 = arith.constant 0 : i32
    return %c0_i32, %c0_i32_0, %c0_i32_1 : i32, i32, i32
  }
  func.func @transform_3(%arg0: i32) -> (i32, i32, i32) {
    %c0_i32 = arith.constant 0 : i32
    %c0_i32_0 = arith.constant 0 : i32
    %c0_i32_1 = arith.constant 0 : i32
    %c0_i32_2 = arith.constant 0 : i32
    return %c0_i32, %c0_i32_0, %c0_i32_1 : i32, i32, i32
  }
  func.func @transform_4(%arg0: i32) -> (i32, i32, i32) {
    %c0_i32 = arith.constant 0 : i32
    %c0_i32_0 = arith.constant 0 : i32
    %c0_i32_1 = arith.constant 0 : i32
    %c0_i32_2 = arith.constant 0 : i32
    return %c0_i32, %c0_i32_0, %c0_i32_1 : i32, i32, i32
  }
  func.func @transform_5(%arg0: i32) -> (i32, i32, i32) {
    %c0_i32 = arith.constant 0 : i32
    %c0_i32_0 = arith.constant 0 : i32
    %c0_i32_1 = arith.constant 0 : i32
    %c0_i32_2 = arith.constant 0 : i32
    return %c0_i32, %c0_i32_0, %c0_i32_1 : i32, i32, i32
  }
  func.func @transform_6(%arg0: i32) -> (i32, i32, i32) {
    %c0_i32 = arith.constant 0 : i32
    %c0_i32_0 = arith.constant 0 : i32
    %c0_i32_1 = arith.constant 0 : i32
    %c0_i32_2 = arith.constant 0 : i32
    return %c0_i32, %c0_i32_0, %c0_i32_1 : i32, i32, i32
  }
  func.func @transform_7(%arg0: i32) -> (i32, i32, i32) {
    %c0_i32 = arith.constant 0 : i32
    %c0_i32_0 = arith.constant 0 : i32
    %c0_i32_1 = arith.constant 0 : i32
    %c0_i32_2 = arith.constant 0 : i32
    return %c0_i32, %c0_i32_0, %c0_i32_1 : i32, i32, i32
  }
  func.func @transform_8(%arg0: i32) -> (i32, i32) {
    %c0_i32 = arith.constant 0 : i32
    %c0_i32_0 = arith.constant 0 : i32
    %c0_i32_1 = arith.constant 0 : i32
    return %c0_i32, %c0_i32_0 : i32, i32
  }
  func.func @transform_9(%arg0: i32) -> (i32, i32) {
    %c0_i32 = arith.constant 0 : i32
    %c0_i32_0 = arith.constant 0 : i32
    %c0_i32_1 = arith.constant 0 : i32
    return %c0_i32, %c0_i32_0 : i32, i32
  }
}

</mosaic_0001>

<llo_original>
// kernel: tpu_custom_call.1
$region0: #{tpu_custom_call.1}
  #allocation0 [shape = 'u32[]', space=smem, size = 0x4, offset = 0x4, fixed_abs, tag = 'smem constant byte address 0x4 - core index']
  #allocation1 [shape = 'u32[72,128]{1,0:T(1,128)}', space=vmem, size = 0x9000, scoped, tag = 'internal scratch']
  %s0 = inlined_call_operand.vmem [shape: bf16[16,32], index: 0, kind: input, shape index: {}]
  %s1 = inlined_call_operand.vmem [shape: bf16[4,32,8], index: 1, kind: input, shape index: {}]
  %s2 = inlined_call_operand.vmem [shape: bf16[4,32,8], index: 2, kind: input, shape index: {}]
  %s3 = inlined_call_operand.vmem [shape: bf16[4,32,8], index: 3, kind: input, shape index: {}]
  %s4 = inlined_call_operand.vmem [shape: f32[4,1,8], index: 4, kind: input, shape index: {}]
  %s5 = inlined_call_operand.vmem [shape: f32[4,1,8], index: 5, kind: input, shape index: {}]
  %s6 = inlined_call_operand.vmem [shape: f32[4,1,8], index: 6, kind: input, shape index: {}]
  %s7 = inlined_call_operand.vmem [shape: bf16[4,8,128], index: 7, kind: input, shape index: {}]
  %s8 = inlined_call_operand.vmem [shape: f32[1,128], index: 8, kind: input, shape index: {}]
  %s9 = inlined_call_operand.hbm [shape: f32[16,128], index: 9, kind: output, shape index: {}]
  %s10 = sld [smem:[#allocation0]]
  $region46: #{tpu_custom_call.1} parent=0
    _
  %s12 = ssub.s32 1, %s10
  %s13 = scalar_select 0, %s12, %s10
  $region1: #{tpu_custom_call.1} parent=0
    #allocation2 [shape = 'u8[8192]{0}', space=vmem, size = 0x2000, scoped, tag = 'output window, operand 0, single buffered']
    #allocation3 [shape = 's32[1]{0}', space=sflag, size = 0x4, scoped, tag = 'scoped memory for tpu_custom_call.1']
    %14 = vsyncpa [#allocation3], 0
    // Predicated region
    $region2: #{tpu_custom_call.1} parent=1 // pred_check
      _
    $region3: #{tpu_custom_call.1} parent=1 // pred_check_branch
      %16 = sbr.rel (0) target = $region5
    $region4: #{tpu_custom_call.1} parent=1 // pred_region
      _
    $region5: #{tpu_custom_call.1} parent=1 // pred_fallthru
      _
    // Predicated region
    $region6: #{tpu_custom_call.1} parent=1 // pred_check
      _
    $region7: #{tpu_custom_call.1} parent=1 // pred_check_branch
      %18 = sbr.rel (0) target = $region9
    $region8: #{tpu_custom_call.1} parent=1 // pred_region
      _
    $region9: #{tpu_custom_call.1} parent=1 // pred_fallthru
      _
    // Predicated region
    $region10: #{tpu_custom_call.1} parent=1 // pred_check
      _
    $region11: #{tpu_custom_call.1} parent=1 // pred_check_branch
      %20 = sbr.rel (0) target = $region13
    $region12: #{tpu_custom_call.1} parent=1 // pred_region
      _
    $region13: #{tpu_custom_call.1} parent=1 // pred_fallthru
      _
    // Predicated region
    $region14: #{tpu_custom_call.1} parent=1 // pred_check
      _
    $region15: #{tpu_custom_call.1} parent=1 // pred_check_branch
      %22 = sbr.rel (0) target = $region17
    $region16: #{tpu_custom_call.1} parent=1 // pred_region
      _
    $region17: #{tpu_custom_call.1} parent=1 // pred_fallthru
      _
    // Predicated region
    $region18: #{tpu_custom_call.1} parent=1 // pred_check
      _
    $region19: #{tpu_custom_call.1} parent=1 // pred_check_branch
      %24 = sbr.rel (0) target = $region21
    $region20: #{tpu_custom_call.1} parent=1 // pred_region
      _
    $region21: #{tpu_custom_call.1} parent=1 // pred_fallthru
      _
    // Predicated region
    $region22: #{tpu_custom_call.1} parent=1 // pred_check
      _
    $region23: #{tpu_custom_call.1} parent=1 // pred_check_branch
      %26 = sbr.rel (0) target = $region25
    $region24: #{tpu_custom_call.1} parent=1 // pred_region
      _
    $region25: #{tpu_custom_call.1} parent=1 // pred_fallthru
      _
    // Predicated region
    $region26: #{tpu_custom_call.1} parent=1 // pred_check
      _
    $region27: #{tpu_custom_call.1} parent=1 // pred_check_branch
      %28 = sbr.rel (0) target = $region29
    $region28: #{tpu_custom_call.1} parent=1 // pred_region
      _
    $region29: #{tpu_custom_call.1} parent=1 // pred_fallthru
      _
    // Predicated region
    $region30: #{tpu_custom_call.1} parent=1 // pred_check
      _
    $region31: #{tpu_custom_call.1} parent=1 // pred_check_branch
      %30 = sbr.rel (0) target = $region33
    $region32: #{tpu_custom_call.1} parent=1 // pred_region
      _
    $region33: #{tpu_custom_call.1} parent=1 // pred_fallthru
      _
    // Predicated region
    $region34: #{tpu_custom_call.1} parent=1 // pred_check
      _
    $region35: #{tpu_custom_call.1} parent=1 // pred_check_branch
      %32 = sbr.rel (0) target = $region37
    $region36: #{tpu_custom_call.1} parent=1 // pred_region
      _
    $region37: #{tpu_custom_call.1} parent=1 // pred_fallthru
      _
    %v34 = vld [vmem:[%s0] sm:$0xf]
    %v35 = vld [vmem:[%s0 + $0x4] sm:$0xf]
    %v36 = vlaneseq
    %v37 = vshrl.u32 %v36, 7
    %v38 = vlaneseq
    %v39 = vand.u32 %v38, 127
    %vm40 = vcmp.ge.s32.totalorder %v37, %v39
    %v41 = vsel %vm40, 0.0, -1e+30
    %v42 = vld [vmem:[%s1] sm:$0xf]
    %v43 = vld [vmem:[%s1 + $0x4] sm:$0xf]
    %v44 = vld [vmem:[%s1 + $0x8] sm:$0xf]
    %v45 = vld [vmem:[%s1 + $0xc] sm:$0xf]
    %v46 = vld [vmem:[%s4] sm:$0x1]
    %v48 = vperm.slane %v46, 0
    %v52 = vunpack.c.l.b16 %v34
    %v53 = vunpack.c.l.b16 %v35
    %v54 = vpack.c.b16 %v53, %v52
    %v59 = vunpack.c.l.b16 %v42
    %v60 = vunpack.c.l.b16 %v43
    %v61 = vunpack.c.l.b16 %v44
    %v62 = vunpack.c.l.b16 %v45
    %v63 = vpack.c.b16 %v60, %v59
    %v64 = vpack.c.b16 %v62, %v61
    %vm67 = vcmask 261120
    %v69 = vsel %vm67, %v54, 0
    %71 = vmatpush.bf16.msra.mxu0 0
    %72 = vmatpush.bf16.msra.mxu0 0
    %73 = vmatpush.bf16.msra.mxu0 0
    %74 = vmatpush.bf16.msra.mxu0 0
    %75 = vmatpush.bf16.msra.mxu0 0
    %76 = vmatpush.bf16.msra.mxu0 0
    %77 = vmatpush.bf16.msra.mxu0 %v64
    %78 = vmatpush.bf16.msra.mxu0 %v63
    %79 = vmatmul.bf16.gmra.mxu0 %v69
    %v80 = vpop.f32.mrf.mxu0
    %v81 = vadd.f32 %v48, %v80
    %v82 = vpop.f32.mrf.mxu0
    %v83 = vadd.f32 %v48, %v82
    %84 = vdwg.mxu0
    %v85 = vld [vmem:[%s2] sm:$0xf]
    %v86 = vld [vmem:[%s2 + $0x4] sm:$0xf]
    %v87 = vld [vmem:[%s2 + $0x8] sm:$0xf]
    %v88 = vld [vmem:[%s2 + $0xc] sm:$0xf]
    %v89 = vld [vmem:[%s5] sm:$0x1]
    %v91 = vperm.slane %v89, 0
    %v97 = vunpack.c.l.b16 %v85
    %v98 = vunpack.c.l.b16 %v86
    %v99 = vunpack.c.l.b16 %v87
    %v100 = vunpack.c.l.b16 %v88
    %v101 = vpack.c.b16 %v98, %v97
    %v102 = vpack.c.b16 %v100, %v99
    %105 = vmatpush.bf16.msra.mxu0 0
    %106 = vmatpush.bf16.msra.mxu0 0
    %107 = vmatpush.bf16.msra.mxu0 0
    %108 = vmatpush.bf16.msra.mxu0 0
    %109 = vmatpush.bf16.msra.mxu0 0
    %110 = vmatpush.bf16.msra.mxu0 0
    %111 = vmatpush.bf16.msra.mxu0 %v102
    %112 = vmatpush.bf16.msra.mxu0 %v101
    %113 = vmatmul.bf16.gmra.mxu0 %v69
    %v114 = vpop.f32.mrf.mxu0
    %v115 = vadd.f32 %v91, %v114
    %v116 = vpop.f32.mrf.mxu0
    %v117 = vadd.f32 %v91, %v116
    %118 = vdwg.mxu0
    %v119 = vld [vmem:[%s3] sm:$0xf]
    %v120 = vld [vmem:[%s3 + $0x4] sm:$0xf]
    %v121 = vld [vmem:[%s3 + $0x8] sm:$0xf]
    %v122 = vld [vmem:[%s3 + $0xc] sm:$0xf]
    %v123 = vld [vmem:[%s6] sm:$0x1]
    %v125 = vperm.slane %v123, 0
    %v131 = vunpack.c.l.b16 %v119
    %v132 = vunpack.c.l.b16 %v120
    %v133 = vunpack.c.l.b16 %v121
    %v134 = vunpack.c.l.b16 %v122
    %v135 = vpack.c.b16 %v132, %v131
    %v136 = vpack.c.b16 %v134, %v133
    %139 = vmatpush.bf16.msra.mxu0 0
    %140 = vmatpush.bf16.msra.mxu0 0
    %141 = vmatpush.bf16.msra.mxu0 0
    %142 = vmatpush.bf16.msra.mxu0 0
    %143 = vmatpush.bf16.msra.mxu0 0
    %144 = vmatpush.bf16.msra.mxu0 0
    %145 = vmatpush.bf16.msra.mxu0 %v136
    %146 = vmatpush.bf16.msra.mxu0 %v135
    %147 = vmatmul.bf16.gmra.mxu0 %v69
    %v148 = vpop.f32.mrf.mxu0
    %v149 = vadd.f32 %v125, %v148
    %v150 = vpop.f32.mrf.mxu0
    %v151 = vadd.f32 %v125, %v150
    %152 = vdwg.mxu0
    %v153 = vpack.c.bf16 %v81, %v81
    %v154 = vpack.c.bf16 %v83, %v83
    %v155 = vpack.c.bf16 %v115, %v115
    %v156 = vpack.c.bf16 %v117, %v117
    %v157 = vpack.c.bf16 %v149, %v149
    %v158 = vpack.c.bf16 %v151, %v151
    %vm159 = vcmask 64512
    %v161 = vsel %vm159, %v153, 0
    %v164 = vsel %vm159, %v155, 0
    %166 = vmatpush.bf16.xpose.msra.mxu0 0
    %167 = vmatpush.bf16.xpose.msra.mxu0 0
    %168 = vmatpush.bf16.xpose.msra.mxu0 0
    %169 = vmatpush.bf16.xpose.msra.mxu0 0
    %170 = vmatpush.bf16.xpose.msra.mxu0 0
    %171 = vmatpush.bf16.xpose.msra.mxu0 0
    %172 = vmatpush.bf16.xpose.msra.mxu0 0
    %173 = vmatpush.bf16.xpose.msra.mxu0 %v164
    %174 = vmatmul.bf16.gmra.mxu0 %v161
    %v175 = vpop.f32.mrf.mxu0
    %v176 = vadd.f32 %v41, %v175
    %v177 = vpop.f32.mrf.mxu0
    %178 = vdwg.mxu0
    %v180 = vsel %vm159, %v154, 0
    %v183 = vsel %vm159, %v156, 0
    %185 = vmatpush.bf16.xpose.msra.mxu0 0
    %186 = vmatpush.bf16.xpose.msra.mxu0 0
    %187 = vmatpush.bf16.xpose.msra.mxu0 0
    %188 = vmatpush.bf16.xpose.msra.mxu0 0
    %189 = vmatpush.bf16.xpose.msra.mxu0 0
    %190 = vmatpush.bf16.xpose.msra.mxu0 0
    %191 = vmatpush.bf16.xpose.msra.mxu0 0
    %192 = vmatpush.bf16.xpose.msra.mxu0 %v183
    %193 = vmatmul.bf16.gmra.mxu0 %v180
    %v194 = vpop.f32.mrf.mxu0
    %v195 = vadd.f32 %v41, %v194
    %v196 = vpop.f32.mrf.mxu0
    %197 = vdwg.mxu0
    %v198 = vsel %vm159, %v176, -inf
    %199 = vmax.xlane.f32.xlu0 %v198
    %v200 = vpop.xlane.xlu0 %199
    %v201 = vsel %vm159, %v195, -inf
    %202 = vmax.xlane.f32.xlu0 %v201
    %v203 = vpop.xlane.xlu0 %202
    %v204 = vsub.f32 %v176, %v200
    %v205 = vsub.f32 %v195, %v203
    %v206 = vmul.f32 %v204, 1.442695
    %v207 = vpow.pop %v206
    %v208 = vmul.f32 %v205, 1.442695
    %v209 = vpow.pop %v208
    %v210 = vsel %vm159, %v207, 0.0
    %211 = vadd.xlane.f32.xlu0 %v210
    %v212 = vpop.xlane.xlu0 %211
    %v213 = vsel %vm159, %v209, 0.0
    %214 = vadd.xlane.f32.xlu0 %v213
    %v215 = vpop.xlane.xlu0 %214
    %v216 = vrcp.pop %v212
    %v217 = vrcp.pop %v215
    %v218 = vmul.f32 %v207, %v216
    %v219 = vmul.f32 %v209, %v217
    %v220 = vpack.c.bf16 %v218, %v218
    %v221 = vpack.c.bf16 %v219, %v219
    %v223 = vsel %vm159, %v220, 0
    %vm225 = vcmask 1043456
    %v227 = vsel %vm225, %v157, 0
    %229 = vmatpush.bf16.msra.mxu0 0
    %230 = vmatpush.bf16.msra.mxu0 0
    %231 = vmatpush.bf16.msra.mxu0 0
    %232 = vmatpush.bf16.msra.mxu0 0
    %233 = vmatpush.bf16.msra.mxu0 0
    %234 = vmatpush.bf16.msra.mxu0 0
    %235 = vmatpush.bf16.msra.mxu0 0
    %236 = vmatpush.bf16.msra.mxu0 %v227
    %237 = vmatmul.bf16.gmra.mxu0 %v223
    %v238 = vpop.f32.mrf.mxu0
    %v239 = vadd.f32 0.0, %v238
    %v240 = vpop.f32.mrf.mxu0
    %241 = vdwg.mxu0
    %v243 = vsel %vm159, %v221, 0
    %v246 = vsel %vm225, %v158, 0
    %248 = vmatpush.bf16.msra.mxu0 0
    %249 = vmatpush.bf16.msra.mxu0 0
    %250 = vmatpush.bf16.msra.mxu0 0
    %251 = vmatpush.bf16.msra.mxu0 0
    %252 = vmatpush.bf16.msra.mxu0 0
    %253 = vmatpush.bf16.msra.mxu0 0
    %254 = vmatpush.bf16.msra.mxu0 0
    %255 = vmatpush.bf16.msra.mxu0 %v246
    %256 = vmatmul.bf16.gmra.mxu0 %v243
    %v257 = vpop.f32.mrf.mxu0
    %v258 = vadd.f32 0.0, %v257
    %v259 = vpop.f32.mrf.mxu0
    %260 = vdwg.mxu0
    %v261 = vpack.c.bf16 %v258, %v239
    %v262 = vld [vmem:[%s7] sm:$0xf]
    %s263 = scalar_lea.vmem %s1, 16
    %v264 = vld [vmem:[%s263] sm:$0xf]
    %v265 = vld [vmem:[%s263 + $0x4] sm:$0xf]
    %v266 = vld [vmem:[%s263 + $0x8] sm:$0xf]
    %v267 = vld [vmem:[%s263 + $0xc] sm:$0xf]
    %s268 = scalar_lea.vmem %s4, 1
    %v269 = vld [vmem:[%s268] sm:$0x1]
    %v271 = vperm.slane %v269, 0
    %v277 = vunpack.c.l.b16 %v264
    %v278 = vunpack.c.l.b16 %v265
    %v279 = vunpack.c.l.b16 %v266
    %v280 = vunpack.c.l.b16 %v267
    %v281 = vpack.c.b16 %v278, %v277
    %v282 = vpack.c.b16 %v280, %v279
    %285 = vmatpush.bf16.msra.mxu0 0
    %286 = vmatpush.bf16.msra.mxu0 0
    %287 = vmatpush.bf16.msra.mxu0 0
    %288 = vmatpush.bf16.msra.mxu0 0
    %289 = vmatpush.bf16.msra.mxu0 0
    %290 = vmatpush.bf16.msra.mxu0 0
    %291 = vmatpush.bf16.msra.mxu0 %v282
    %292 = vmatpush.bf16.msra.mxu0 %v281
    %293 = vmatmul.bf16.gmra.mxu0 %v69
    %v294 = vpop.f32.mrf.mxu0
    %v295 = vadd.f32 %v271, %v294
    %v296 = vpop.f32.mrf.mxu0
    %v297 = vadd.f32 %v271, %v296
    %298 = vdwg.mxu0
    %s299 = scalar_lea.vmem %s2, 16
    %v300 = vld [vmem:[%s299] sm:$0xf]
    %v301 = vld [vmem:[%s299 + $0x4] sm:$0xf]
    %v302 = vld [vmem:[%s299 + $0x8] sm:$0xf]
    %v303 = vld [vmem:[%s299 + $0xc] sm:$0xf]
    %s304 = scalar_lea.vmem %s5, 1
    %v305 = vld [vmem:[%s304] sm:$0x1]
    %v307 = vperm.slane %v305, 0
    %v313 = vunpack.c.l.b16 %v300
    %v314 = vunpack.c.l.b16 %v301
    %v315 = vunpack.c.l.b16 %v302
    %v316 = vunpack.c.l.b16 %v303
    %v317 = vpack.c.b16 %v314, %v313
    %v318 = vpack.c.b16 %v316, %v315
    %321 = vmatpush.bf16.msra.mxu0 0
    %322 = vmatpush.bf16.msra.mxu0 0
    %323 = vmatpush.bf16.msra.mxu0 0
    %324 = vmatpush.bf16.msra.mxu0 0
    %325 = vmatpush.bf16.msra.mxu0 0
    %326 = vmatpush.bf16.msra.mxu0 0
    %327 = vmatpush.bf16.msra.mxu0 %v318
    %328 = vmatpush.bf16.msra.mxu0 %v317
    %329 = vmatmul.bf16.gmra.mxu0 %v69
    %v330 = vpop.f32.mrf.mxu0
    %v331 = vadd.f32 %v307, %v330
    %v332 = vpop.f32.mrf.mxu0
    %v333 = vadd.f32 %v307, %v332
    %334 = vdwg.mxu0
    %s335 = scalar_lea.vmem %s3, 16
    %v336 = vld [vmem:[%s335] sm:$0xf]
    %v337 = vld [vmem:[%s335 + $0x4] sm:$0xf]
    %v338 = vld [vmem:[%s335 + $0x8] sm:$0xf]
    %v339 = vld [vmem:[%s335 + $0xc] sm:$0xf]
    %s340 = scalar_lea.vmem %s6, 1
    %v341 = vld [vmem:[%s340] sm:$0x1]
    %v343 = vperm.slane %v341, 0
    %v349 = vunpack.c.l.b16 %v336
    %v350 = vunpack.c.l.b16 %v337
    %v351 = vunpack.c.l.b16 %v338
    %v352 = vunpack.c.l.b16 %v339
    %v353 = vpack.c.b16 %v350, %v349
    %v354 = vpack.c.b16 %v352, %v351
    %357 = vmatpush.bf16.msra.mxu0 0
    %358 = vmatpush.bf16.msra.mxu0 0
    %359 = vmatpush.bf16.msra.mxu0 0
    %360 = vmatpush.bf16.msra.mxu0 0
    %361 = vmatpush.bf16.msra.mxu0 0
    %362 = vmatpush.bf16.msra.mxu0 0
    %363 = vmatpush.bf16.msra.mxu0 %v354
    %364 = vmatpush.bf16.msra.mxu0 %v353
    %365 = vmatmul.bf16.gmra.mxu0 %v69
    %v366 = vpop.f32.mrf.mxu0
    %v367 = vadd.f32 %v343, %v366
    %v368 = vpop.f32.mrf.mxu0
    %v369 = vadd.f32 %v343, %v368
    %370 = vdwg.mxu0
    %v371 = vpack.c.bf16 %v295, %v295
    %v372 = vpack.c.bf16 %v297, %v297
    %v373 = vpack.c.bf16 %v331, %v331
    %v374 = vpack.c.bf16 %v333, %v333
    %v375 = vpack.c.bf16 %v367, %v367
    %v376 = vpack.c.bf16 %v369, %v369
    %v378 = vsel %vm159, %v371, 0
    %v381 = vsel %vm159, %v373, 0
    %383 = vmatpush.bf16.xpose.msra.mxu0 0
    %384 = vmatpush.bf16.xpose.msra.mxu0 0
    %385 = vmatpush.bf16.xpose.msra.mxu0 0
    %386 = vmatpush.bf16.xpose.msra.mxu0 0
    %387 = vmatpush.bf16.xpose.msra.mxu0 0
    %388 = vmatpush.bf16.xpose.msra.mxu0 0
    %389 = vmatpush.bf16.xpose.msra.mxu0 0
    %390 = vmatpush.bf16.xpose.msra.mxu0 %v381
    %391 = vmatmul.bf16.gmra.mxu0 %v378
    %v392 = vpop.f32.mrf.mxu0
    %v393 = vadd.f32 %v41, %v392
    %v394 = vpop.f32.mrf.mxu0
    %395 = vdwg.mxu0
    %v397 = vsel %vm159, %v372, 0
    %v400 = vsel %vm159, %v374, 0
    %402 = vmatpush.bf16.xpose.msra.mxu0 0
    %403 = vmatpush.bf16.xpose.msra.mxu0 0
    %404 = vmatpush.bf16.xpose.msra.mxu0 0
    %405 = vmatpush.bf16.xpose.msra.mxu0 0
    %406 = vmatpush.bf16.xpose.msra.mxu0 0
    %407 = vmatpush.bf16.xpose.msra.mxu0 0
    %408 = vmatpush.bf16.xpose.msra.mxu0 0
    %409 = vmatpush.bf16.xpose.msra.mxu0 %v400
    %410 = vmatmul.bf16.gmra.mxu0 %v397
    %v411 = vpop.f32.mrf.mxu0
    %v412 = vadd.f32 %v41, %v411
    %v413 = vpop.f32.mrf.mxu0
    %414 = vdwg.mxu0
    %v415 = vsel %vm159, %v393, -inf
    %416 = vmax.xlane.f32.xlu0 %v415
    %v417 = vpop.xlane.xlu0 %416
    %v418 = vsel %vm159, %v412, -inf
    %419 = vmax.xlane.f32.xlu0 %v418
    %v420 = vpop.xlane.xlu0 %419
    %v421 = vsub.f32 %v393, %v417
    %v422 = vsub.f32 %v412, %v420
    %v423 = vmul.f32 %v421, 1.442695
    %v424 = vpow.pop %v423
    %v425 = vmul.f32 %v422, 1.442695
    %v426 = vpow.pop %v425
    %v427 = vsel %vm159, %v424, 0.0
    %428 = vadd.xlane.f32.xlu0 %v427
    %v429 = vpop.xlane.xlu0 %428
    %v430 = vsel %vm159, %v426, 0.0
    %431 = vadd.xlane.f32.xlu0 %v430
    %v432 = vpop.xlane.xlu0 %431
    %v433 = vrcp.pop %v429
    %v434 = vrcp.pop %v432
    %v435 = vmul.f32 %v424, %v433
    %v436 = vmul.f32 %v426, %v434
    %v437 = vpack.c.bf16 %v435, %v435
    %v438 = vpack.c.bf16 %v436, %v436
    %v440 = vsel %vm159, %v437, 0
    %v443 = vsel %vm225, %v375, 0
    %445 = vmatpush.bf16.msra.mxu0 0
    %446 = vmatpush.bf16.msra.mxu0 0
    %447 = vmatpush.bf16.msra.mxu0 0
    %448 = vmatpush.bf16.msra.mxu0 0
    %449 = vmatpush.bf16.msra.mxu0 0
    %450 = vmatpush.bf16.msra.mxu0 0
    %451 = vmatpush.bf16.msra.mxu0 0
    %452 = vmatpush.bf16.msra.mxu0 %v443
    %453 = vmatmul.bf16.gmra.mxu0 %v440
    %v454 = vpop.f32.mrf.mxu0
    %v455 = vadd.f32 0.0, %v454
    %v456 = vpop.f32.mrf.mxu0
    %457 = vdwg.mxu0
    %v459 = vsel %vm159, %v438, 0
    %v462 = vsel %vm225, %v376, 0
    %464 = vmatpush.bf16.msra.mxu0 0
    %465 = vmatpush.bf16.msra.mxu0 0
    %466 = vmatpush.bf16.msra.mxu0 0
    %467 = vmatpush.bf16.msra.mxu0 0
    %468 = vmatpush.bf16.msra.mxu0 0
    %469 = vmatpush.bf16.msra.mxu0 0
    %470 = vmatpush.bf16.msra.mxu0 0
    %471 = vmatpush.bf16.msra.mxu0 %v462
    %472 = vmatmul.bf16.gmra.mxu0 %v459
    %v473 = vpop.f32.mrf.mxu0
    %v474 = vadd.f32 0.0, %v473
    %v475 = vpop.f32.mrf.mxu0
    %476 = vdwg.mxu0
    %v477 = vpack.c.bf16 %v474, %v455
    %s478 = scalar_lea.vmem %s7, 4
    %v479 = vld [vmem:[%s478] sm:$0xf]
    %v481 = vsel %vm159, %v477, 0
    %v484 = vsel %vm225, %v479, 0
    %486 = vmatpush.bf16.msra.mxu0 0
    %487 = vmatpush.bf16.msra.mxu0 0
    %488 = vmatpush.bf16.msra.mxu0 0
    %489 = vmatpush.bf16.msra.mxu0 0
    %490 = vmatpush.bf16.msra.mxu0 0
    %491 = vmatpush.bf16.msra.mxu0 0
    %492 = vmatpush.bf16.msra.mxu0 0
    %493 = vmatpush.bf16.msra.mxu0 %v484
    %494 = vmatmul.bf16.gmra.mxu0 %v481
    %v495 = vpop.f32.mrf.mxu0
    %v496 = vadd.f32 0.0, %v495
    %v497 = vpop.f32.mrf.mxu0
    %v498 = vadd.f32 0.0, %v497
    %499 = vdwg.mxu0
    %v501 = vsel %vm159, %v261, 0
    %v504 = vsel %vm225, %v262, 0
    %506 = vmatpush.bf16.msra.mxu0 0
    %507 = vmatpush.bf16.msra.mxu0 0
    %508 = vmatpush.bf16.msra.mxu0 0
    %509 = vmatpush.bf16.msra.mxu0 0
    %510 = vmatpush.bf16.msra.mxu0 0
    %511 = vmatpush.bf16.msra.mxu0 0
    %512 = vmatpush.bf16.msra.mxu0 0
    %513 = vmatpush.bf16.msra.mxu0 %v504
    %514 = vmatmul.bf16.gmra.mxu0 %v501
    %v515 = vpop.f32.mrf.mxu0
    %v516 = vadd.f32 %v496, %v515
    %v517 = vpop.f32.mrf.mxu0
    %v518 = vadd.f32 %v498, %v517
    %519 = vdwg.mxu0
    %s520 = scalar_lea.vmem %s1, 32
    %v521 = vld [vmem:[%s520] sm:$0xf]
    %v522 = vld [vmem:[%s520 + $0x4] sm:$0xf]
    %v523 = vld [vmem:[%s520 + $0x8] sm:$0xf]
    %v524 = vld [vmem:[%s520 + $0xc] sm:$0xf]
    %s525 = scalar_lea.vmem %s4, 2
    %v526 = vld [vmem:[%s525] sm:$0x1]
    %v528 = vperm.slane %v526, 0
    %v534 = vunpack.c.l.b16 %v521
    %v535 = vunpack.c.l.b16 %v522
    %v536 = vunpack.c.l.b16 %v523
    %v537 = vunpack.c.l.b16 %v524
    %v538 = vpack.c.b16 %v535, %v534
    %v539 = vpack.c.b16 %v537, %v536
    %542 = vmatpush.bf16.msra.mxu0 0
    %543 = vmatpush.bf16.msra.mxu0 0
    %544 = vmatpush.bf16.msra.mxu0 0
    %545 = vmatpush.bf16.msra.mxu0 0
    %546 = vmatpush.bf16.msra.mxu0 0
    %547 = vmatpush.bf16.msra.mxu0 0
    %548 = vmatpush.bf16.msra.mxu0 %v539
    %549 = vmatpush.bf16.msra.mxu0 %v538
    %550 = vmatmul.bf16.gmra.mxu0 %v69
    %v551 = vpop.f32.mrf.mxu0
    %v552 = vadd.f32 %v528, %v551
    %v553 = vpop.f32.mrf.mxu0
    %v554 = vadd.f32 %v528, %v553
    %555 = vdwg.mxu0
    %s556 = scalar_lea.vmem %s2, 32
    %v557 = vld [vmem:[%s556] sm:$0xf]
    %v558 = vld [vmem:[%s556 + $0x4] sm:$0xf]
    %v559 = vld [vmem:[%s556 + $0x8] sm:$0xf]
    %v560 = vld [vmem:[%s556 + $0xc] sm:$0xf]
    %s561 = scalar_lea.vmem %s5, 2
    %v562 = vld [vmem:[%s561] sm:$0x1]
    %v564 = vperm.slane %v562, 0
    %v570 = vunpack.c.l.b16 %v557
    %v571 = vunpack.c.l.b16 %v558
    %v572 = vunpack.c.l.b16 %v559
    %v573 = vunpack.c.l.b16 %v560
    %v574 = vpack.c.b16 %v571, %v570
    %v575 = vpack.c.b16 %v573, %v572
    %578 = vmatpush.bf16.msra.mxu0 0
    %579 = vmatpush.bf16.msra.mxu0 0
    %580 = vmatpush.bf16.msra.mxu0 0
    %581 = vmatpush.bf16.msra.mxu0 0
    %582 = vmatpush.bf16.msra.mxu0 0
    %583 = vmatpush.bf16.msra.mxu0 0
    %584 = vmatpush.bf16.msra.mxu0 %v575
    %585 = vmatpush.bf16.msra.mxu0 %v574
    %586 = vmatmul.bf16.gmra.mxu0 %v69
    %v587 = vpop.f32.mrf.mxu0
    %v588 = vadd.f32 %v564, %v587
    %v589 = vpop.f32.mrf.mxu0
    %v590 = vadd.f32 %v564, %v589
    %591 = vdwg.mxu0
    %s592 = scalar_lea.vmem %s3, 32
    %v593 = vld [vmem:[%s592] sm:$0xf]
    %v594 = vld [vmem:[%s592 + $0x4] sm:$0xf]
    %v595 = vld [vmem:[%s592 + $0x8] sm:$0xf]
    %v596 = vld [vmem:[%s592 + $0xc] sm:$0xf]
    %s597 = scalar_lea.vmem %s6, 2
    %v598 = vld [vmem:[%s597] sm:$0x1]
    %v600 = vperm.slane %v598, 0
    %v606 = vunpack.c.l.b16 %v593
    %v607 = vunpack.c.l.b16 %v594
    %v608 = vunpack.c.l.b16 %v595
    %v609 = vunpack.c.l.b16 %v596
    %v610 = vpack.c.b16 %v607, %v606
    %v611 = vpack.c.b16 %v609, %v608
    %614 = vmatpush.bf16.msra.mxu0 0
    %615 = vmatpush.bf16.msra.mxu0 0
    %616 = vmatpush.bf16.msra.mxu0 0
    %617 = vmatpush.bf16.msra.mxu0 0
    %618 = vmatpush.bf16.msra.mxu0 0
    %619 = vmatpush.bf16.msra.mxu0 0
    %620 = vmatpush.bf16.msra.mxu0 %v611
    %621 = vmatpush.bf16.msra.mxu0 %v610
    %622 = vmatmul.bf16.gmra.mxu0 %v69
    %v623 = vpop.f32.mrf.mxu0
    %v624 = vadd.f32 %v600, %v623
    %v625 = vpop.f32.mrf.mxu0
    %v626 = vadd.f32 %v600, %v625
    %627 = vdwg.mxu0
    %v628 = vpack.c.bf16 %v552, %v552
    %v629 = vpack.c.bf16 %v554, %v554
    %v630 = vpack.c.bf16 %v588, %v588
    %v631 = vpack.c.bf16 %v590, %v590
    %v632 = vpack.c.bf16 %v624, %v624
    %v633 = vpack.c.bf16 %v626, %v626
    %v635 = vsel %vm159, %v628, 0
    %v638 = vsel %vm159, %v630, 0
    %640 = vmatpush.bf16.xpose.msra.mxu0 0
    %641 = vmatpush.bf16.xpose.msra.mxu0 0
    %642 = vmatpush.bf16.xpose.msra.mxu0 0
    %643 = vmatpush.bf16.xpose.msra.mxu0 0
    %644 = vmatpush.bf16.xpose.msra.mxu0 0
    %645 = vmatpush.bf16.xpose.msra.mxu0 0
    %646 = vmatpush.bf16.xpose.msra.mxu0 0
    %647 = vmatpush.bf16.xpose.msra.mxu0 %v638
    %648 = vmatmul.bf16.gmra.mxu0 %v635
    %v649 = vpop.f32.mrf.mxu0
    %v650 = vadd.f32 %v41, %v649
    %v651 = vpop.f32.mrf.mxu0
    %652 = vdwg.mxu0
    %v654 = vsel %vm159, %v629, 0
    %v657 = vsel %vm159, %v631, 0
    %659 = vmatpush.bf16.xpose.msra.mxu0 0
    %660 = vmatpush.bf16.xpose.msra.mxu0 0
    %661 = vmatpush.bf16.xpose.msra.mxu0 0
    %662 = vmatpush.bf16.xpose.msra.mxu0 0
    %663 = vmatpush.bf16.xpose.msra.mxu0 0
    %664 = vmatpush.bf16.xpose.msra.mxu0 0
    %665 = vmatpush.bf16.xpose.msra.mxu0 0
    %666 = vmatpush.bf16.xpose.msra.mxu0 %v657
    %667 = vmatmul.bf16.gmra.mxu0 %v654
    %v668 = vpop.f32.mrf.mxu0
    %v669 = vadd.f32 %v41, %v668
    %v670 = vpop.f32.mrf.mxu0
    %671 = vdwg.mxu0
    %v672 = vsel %vm159, %v650, -inf
    %673 = vmax.xlane.f32.xlu0 %v672
    %v674 = vpop.xlane.xlu0 %673
    %v675 = vsel %vm159, %v669, -inf
    %676 = vmax.xlane.f32.xlu0 %v675
    %v677 = vpop.xlane.xlu0 %676
    %v678 = vsub.f32 %v650, %v674
    %v679 = vsub.f32 %v669, %v677
    %v680 = vmul.f32 %v678, 1.442695
    %v681 = vpow.pop %v680
    %v682 = vmul.f32 %v679, 1.442695
    %v683 = vpow.pop %v682
    %v684 = vsel %vm159, %v681, 0.0
    %685 = vadd.xlane.f32.xlu0 %v684
    %v686 = vpop.xlane.xlu0 %685
    %v687 = vsel %vm159, %v683, 0.0
    %688 = vadd.xlane.f32.xlu0 %v687
    %v689 = vpop.xlane.xlu0 %688
    %v690 = vrcp.pop %v686
    %v691 = vrcp.pop %v689
    %v692 = vmul.f32 %v681, %v690
    %v693 = vmul.f32 %v683, %v691
    %v694 = vpack.c.bf16 %v692, %v692
    %v695 = vpack.c.bf16 %v693, %v693
    %v697 = vsel %vm159, %v694, 0
    %v700 = vsel %vm225, %v632, 0
    %702 = vmatpush.bf16.msra.mxu0 0
    %703 = vmatpush.bf16.msra.mxu0 0
    %704 = vmatpush.bf16.msra.mxu0 0
    %705 = vmatpush.bf16.msra.mxu0 0
    %706 = vmatpush.bf16.msra.mxu0 0
    %707 = vmatpush.bf16.msra.mxu0 0
    %708 = vmatpush.bf16.msra.mxu0 0
    %709 = vmatpush.bf16.msra.mxu0 %v700
    %710 = vmatmul.bf16.gmra.mxu0 %v697
    %v711 = vpop.f32.mrf.mxu0
    %v712 = vadd.f32 0.0, %v711
    %v713 = vpop.f32.mrf.mxu0
    %714 = vdwg.mxu0
    %v716 = vsel %vm159, %v695, 0
    %v719 = vsel %vm225, %v633, 0
    %721 = vmatpush.bf16.msra.mxu0 0
    %722 = vmatpush.bf16.msra.mxu0 0
    %723 = vmatpush.bf16.msra.mxu0 0
    %724 = vmatpush.bf16.msra.mxu0 0
    %725 = vmatpush.bf16.msra.mxu0 0
    %726 = vmatpush.bf16.msra.mxu0 0
    %727 = vmatpush.bf16.msra.mxu0 0
    %728 = vmatpush.bf16.msra.mxu0 %v719
    %729 = vmatmul.bf16.gmra.mxu0 %v716
    %v730 = vpop.f32.mrf.mxu0
    %v731 = vadd.f32 0.0, %v730
    %v732 = vpop.f32.mrf.mxu0
    %733 = vdwg.mxu0
    %v734 = vpack.c.bf16 %v731, %v712
    %s735 = scalar_lea.vmem %s7, 8
    %v736 = vld [vmem:[%s735] sm:$0xf]
    %v738 = vsel %vm159, %v734, 0
    %v741 = vsel %vm225, %v736, 0
    %743 = vmatpush.bf16.msra.mxu0 0
    %744 = vmatpush.bf16.msra.mxu0 0
    %745 = vmatpush.bf16.msra.mxu0 0
    %746 = vmatpush.bf16.msra.mxu0 0
    %747 = vmatpush.bf16.msra.mxu0 0
    %748 = vmatpush.bf16.msra.mxu0 0
    %749 = vmatpush.bf16.msra.mxu0 0
    %750 = vmatpush.bf16.msra.mxu0 %v741
    %751 = vmatmul.bf16.gmra.mxu0 %v738
    %v752 = vpop.f32.mrf.mxu0
    %v753 = vadd.f32 0.0, %v752
    %v754 = vpop.f32.mrf.mxu0
    %v755 = vadd.f32 0.0, %v754
    %756 = vdwg.mxu0
    %v757 = vadd.f32 %v516, %v753
    %v758 = vadd.f32 %v518, %v755
    %s759 = scalar_lea.vmem %s1, 48
    %v760 = vld [vmem:[%s759] sm:$0xf]
    %v761 = vld [vmem:[%s759 + $0x4] sm:$0xf]
    %v762 = vld [vmem:[%s759 + $0x8] sm:$0xf]
    %v763 = vld [vmem:[%s759 + $0xc] sm:$0xf]
    %s764 = scalar_lea.vmem %s4, 3
    %v765 = vld [vmem:[%s764] sm:$0x1]
    %v767 = vperm.slane %v765, 0
    %v773 = vunpack.c.l.b16 %v760
    %v774 = vunpack.c.l.b16 %v761
    %v775 = vunpack.c.l.b16 %v762
    %v776 = vunpack.c.l.b16 %v763
    %v777 = vpack.c.b16 %v774, %v773
    %v778 = vpack.c.b16 %v776, %v775
    %781 = vmatpush.bf16.msra.mxu0 0
    %782 = vmatpush.bf16.msra.mxu0 0
    %783 = vmatpush.bf16.msra.mxu0 0
    %784 = vmatpush.bf16.msra.mxu0 0
    %785 = vmatpush.bf16.msra.mxu0 0
    %786 = vmatpush.bf16.msra.mxu0 0
    %787 = vmatpush.bf16.msra.mxu0 %v778
    %788 = vmatpush.bf16.msra.mxu0 %v777
    %789 = vmatmul.bf16.gmra.mxu0 %v69
    %v790 = vpop.f32.mrf.mxu0
    %v791 = vadd.f32 %v767, %v790
    %v792 = vpop.f32.mrf.mxu0
    %v793 = vadd.f32 %v767, %v792
    %794 = vdwg.mxu0
    %s795 = scalar_lea.vmem %s2, 48
    %v796 = vld [vmem:[%s795] sm:$0xf]
    %v797 = vld [vmem:[%s795 + $0x4] sm:$0xf]
    %v798 = vld [vmem:[%s795 + $0x8] sm:$0xf]
    %v799 = vld [vmem:[%s795 + $0xc] sm:$0xf]
    %s800 = scalar_lea.vmem %s5, 3
    %v801 = vld [vmem:[%s800] sm:$0x1]
    %v803 = vperm.slane %v801, 0
    %v809 = vunpack.c.l.b16 %v796
    %v810 = vunpack.c.l.b16 %v797
    %v811 = vunpack.c.l.b16 %v798
    %v812 = vunpack.c.l.b16 %v799
    %v813 = vpack.c.b16 %v810, %v809
    %v814 = vpack.c.b16 %v812, %v811
    %817 = vmatpush.bf16.msra.mxu0 0
    %818 = vmatpush.bf16.msra.mxu0 0
    %819 = vmatpush.bf16.msra.mxu0 0
    %820 = vmatpush.bf16.msra.mxu0 0
    %821 = vmatpush.bf16.msra.mxu0 0
    %822 = vmatpush.bf16.msra.mxu0 0
    %823 = vmatpush.bf16.msra.mxu0 %v814
    %824 = vmatpush.bf16.msra.mxu0 %v813
    %825 = vmatmul.bf16.gmra.mxu0 %v69
    %v826 = vpop.f32.mrf.mxu0
    %v827 = vadd.f32 %v803, %v826
    %v828 = vpop.f32.mrf.mxu0
    %v829 = vadd.f32 %v803, %v828
    %830 = vdwg.mxu0
    %s831 = scalar_lea.vmem %s3, 48
    %v832 = vld [vmem:[%s831] sm:$0xf]
    %v833 = vld [vmem:[%s831 + $0x4] sm:$0xf]
    %v834 = vld [vmem:[%s831 + $0x8] sm:$0xf]
    %v835 = vld [vmem:[%s831 + $0xc] sm:$0xf]
    %s836 = scalar_lea.vmem %s6, 3
    %v837 = vld [vmem:[%s836] sm:$0x1]
    %v839 = vperm.slane %v837, 0
    %v845 = vunpack.c.l.b16 %v832
    %v846 = vunpack.c.l.b16 %v833
    %v847 = vunpack.c.l.b16 %v834
    %v848 = vunpack.c.l.b16 %v835
    %v849 = vpack.c.b16 %v846, %v845
    %v850 = vpack.c.b16 %v848, %v847
    %853 = vmatpush.bf16.msra.mxu0 0
    %854 = vmatpush.bf16.msra.mxu0 0
    %855 = vmatpush.bf16.msra.mxu0 0
    %856 = vmatpush.bf16.msra.mxu0 0
    %857 = vmatpush.bf16.msra.mxu0 0
    %858 = vmatpush.bf16.msra.mxu0 0
    %859 = vmatpush.bf16.msra.mxu0 %v850
    %860 = vmatpush.bf16.msra.mxu0 %v849
    %861 = vmatmul.bf16.gmra.mxu0 %v69
    %v862 = vpop.f32.mrf.mxu0
    %v863 = vadd.f32 %v839, %v862
    %v864 = vpop.f32.mrf.mxu0
    %v865 = vadd.f32 %v839, %v864
    %866 = vdwg.mxu0
    %v867 = vpack.c.bf16 %v791, %v791
    %v868 = vpack.c.bf16 %v793, %v793
    %v869 = vpack.c.bf16 %v827, %v827
    %v870 = vpack.c.bf16 %v829, %v829
    %v871 = vpack.c.bf16 %v863, %v863
    %v872 = vpack.c.bf16 %v865, %v865
    %v874 = vsel %vm159, %v867, 0
    %v877 = vsel %vm159, %v869, 0
    %879 = vmatpush.bf16.xpose.msra.mxu0 0
    %880 = vmatpush.bf16.xpose.msra.mxu0 0
    %881 = vmatpush.bf16.xpose.msra.mxu0 0
    %882 = vmatpush.bf16.xpose.msra.mxu0 0
    %883 = vmatpush.bf16.xpose.msra.mxu0 0
    %884 = vmatpush.bf16.xpose.msra.mxu0 0
    %885 = vmatpush.bf16.xpose.msra.mxu0 0
    %886 = vmatpush.bf16.xpose.msra.mxu0 %v877
    %887 = vmatmul.bf16.gmra.mxu0 %v874
    %v888 = vpop.f32.mrf.mxu0
    %v889 = vadd.f32 %v41, %v888
    %v890 = vpop.f32.mrf.mxu0
    %891 = vdwg.mxu0
    %v893 = vsel %vm159, %v868, 0
    %v896 = vsel %vm159, %v870, 0
    %898 = vmatpush.bf16.xpose.msra.mxu0 0
    %899 = vmatpush.bf16.xpose.msra.mxu0 0
    %900 = vmatpush.bf16.xpose.msra.mxu0 0
    %901 = vmatpush.bf16.xpose.msra.mxu0 0
    %902 = vmatpush.bf16.xpose.msra.mxu0 0
    %903 = vmatpush.bf16.xpose.msra.mxu0 0
    %904 = vmatpush.bf16.xpose.msra.mxu0 0
    %905 = vmatpush.bf16.xpose.msra.mxu0 %v896
    %906 = vmatmul.bf16.gmra.mxu0 %v893
    %v907 = vpop.f32.mrf.mxu0
    %v908 = vadd.f32 %v41, %v907
    %v909 = vpop.f32.mrf.mxu0
    %910 = vdwg.mxu0
    %v911 = vsel %vm159, %v889, -inf
    %912 = vmax.xlane.f32.xlu0 %v911
    %v913 = vpop.xlane.xlu0 %912
    %v914 = vsel %vm159, %v908, -inf
    %915 = vmax.xlane.f32.xlu0 %v914
    %v916 = vpop.xlane.xlu0 %915
    %v917 = vsub.f32 %v889, %v913
    %v918 = vsub.f32 %v908, %v916
    %v919 = vmul.f32 %v917, 1.442695
    %v920 = vpow.pop %v919
    %v921 = vmul.f32 %v918, 1.442695
    %v922 = vpow.pop %v921
    %v923 = vsel %vm159, %v920, 0.0
    %924 = vadd.xlane.f32.xlu0 %v923
    %v925 = vpop.xlane.xlu0 %924
    %v926 = vsel %vm159, %v922, 0.0
    %927 = vadd.xlane.f32.xlu0 %v926
    %v928 = vpop.xlane.xlu0 %927
    %v929 = vrcp.pop %v925
    %v930 = vrcp.pop %v928
    %v931 = vmul.f32 %v920, %v929
    %v932 = vmul.f32 %v922, %v930
    %v933 = vpack.c.bf16 %v931, %v931
    %v934 = vpack.c.bf16 %v932, %v932
    %v936 = vsel %vm159, %v933, 0
    %v939 = vsel %vm225, %v871, 0
    %941 = vmatpush.bf16.msra.mxu0 0
    %942 = vmatpush.bf16.msra.mxu0 0
    %943 = vmatpush.bf16.msra.mxu0 0
    %944 = vmatpush.bf16.msra.mxu0 0
    %945 = vmatpush.bf16.msra.mxu0 0
    %946 = vmatpush.bf16.msra.mxu0 0
    %947 = vmatpush.bf16.msra.mxu0 0
    %948 = vmatpush.bf16.msra.mxu0 %v939
    %949 = vmatmul.bf16.gmra.mxu0 %v936
    %v950 = vpop.f32.mrf.mxu0
    %v951 = vadd.f32 0.0, %v950
    %v952 = vpop.f32.mrf.mxu0
    %953 = vdwg.mxu0
    %v955 = vsel %vm159, %v934, 0
    %v958 = vsel %vm225, %v872, 0
    %960 = vmatpush.bf16.msra.mxu0 0
    %961 = vmatpush.bf16.msra.mxu0 0
    %962 = vmatpush.bf16.msra.mxu0 0
    %963 = vmatpush.bf16.msra.mxu0 0
    %964 = vmatpush.bf16.msra.mxu0 0
    %965 = vmatpush.bf16.msra.mxu0 0
    %966 = vmatpush.bf16.msra.mxu0 0
    %967 = vmatpush.bf16.msra.mxu0 %v958
    %968 = vmatmul.bf16.gmra.mxu0 %v955
    %v969 = vpop.f32.mrf.mxu0
    %v970 = vadd.f32 0.0, %v969
    %v971 = vpop.f32.mrf.mxu0
    %972 = vdwg.mxu0
    %v973 = vpack.c.bf16 %v970, %v951
    %s974 = scalar_lea.vmem %s7, 12
    %v975 = vld [vmem:[%s974] sm:$0xf]
    %v977 = vsel %vm159, %v973, 0
    %v980 = vsel %vm225, %v975, 0
    %982 = vmatpush.bf16.msra.mxu0 0
    %983 = vmatpush.bf16.msra.mxu0 0
    %984 = vmatpush.bf16.msra.mxu0 0
    %985 = vmatpush.bf16.msra.mxu0 0
    %986 = vmatpush.bf16.msra.mxu0 0
    %987 = vmatpush.bf16.msra.mxu0 0
    %988 = vmatpush.bf16.msra.mxu0 0
    %989 = vmatpush.bf16.msra.mxu0 %v980
    %990 = vmatmul.bf16.gmra.mxu0 %v977
    %v991 = vpop.f32.mrf.mxu0
    %v992 = vadd.f32 0.0, %v991
    %v993 = vpop.f32.mrf.mxu0
    %v994 = vadd.f32 0.0, %v993
    %995 = vdwg.mxu0
    %v996 = vadd.f32 %v757, %v992
    %v997 = vadd.f32 %v758, %v994
    %v998 = vld [vmem:[%s8] sm:$0x1]
    %v1000 = vperm.slane %v998, 0
    %v1002 = vadd.f32 %v996, %v1000
    %v1003 = vadd.f32 %v997, %v1000
    %1004 = vst [vmem:[#allocation2] sm:$0xff] %v1002
    %1005 = vst [vmem:[#allocation2 + $0x8] sm:$0xff] %v1003
    // Predicated region
    $region38: #{tpu_custom_call.1} parent=1 // pred_check
      _
    $region39: #{tpu_custom_call.1} parent=1 // pred_check_branch
      %1007 = sbr.rel (0) target = $region41
    $region40: #{tpu_custom_call.1} parent=1 // pred_region
      %1009 = vsyncadd [#allocation3], 0
      %s1010 = sshll.u32 [#allocation2], 4
      %s1011 = int_to_ptr.vmem [resolvable:$true] %s1010
      %s1012 = sshll.u32 %s9, 4
      %s1013 = int_to_ptr.hbm [resolvable:$true] %s1012
      %1018 = dma.vmem_to_hbm [thread:$0]  %s1011, 256, %s1013, [#allocation3], 128, 128, 8
    $region41: #{tpu_custom_call.1} parent=1 // pred_fallthru
      _
    // Predicated region
    $region42: #{tpu_custom_call.1} parent=1 // pred_check
      _
    $region43: #{tpu_custom_call.1} parent=1 // pred_check_branch
      %1020 = sbr.rel (0) target = $region45
    $region44: #{tpu_custom_call.1} parent=1 // pred_region
      %1022 = dma.done [#allocation3], 256
    $region45: #{tpu_custom_call.1} parent=1 // pred_fallthru
      _
    %1023 = vsyncpa [#allocation3], 1

</llo_original>
